<compile_context>
chip_gen: v5e
topology: v5e:2x2
jax: 0.10.0
libtpu: 0.0.40
codegen_flags: <defaults>
</compile_context>

<pallas_src>
import functools

import jax
import jax.numpy as jnp
import numpy as np
from jax import lax
from jax.experimental import pallas as pl
from jax.experimental.pallas import tpu as pltpu

KERNEL_SIZE = 3


# --------------------------------------------------------------------------
# Pallas kernel
# --------------------------------------------------------------------------
def _tcn_kernel(cfgs, dims, x_ref, slab_ref, wbig_ref, bfin_ref, o_ref):
    B, L, O, K = dims["B"], dims["L"], dims["O"], dims["K"]
    BL = B * L

    # Hoisted causal masks: one (BL, 1) 0/1 mask per unique nonzero shift, reused by
    # every tap of every layer.  Rows are (batch, time) flattened, so masking
    # t_local < s also kills the rows that pltpu.roll wrapped across batch-element
    # boundaries.
    t_loc = lax.broadcasted_iota(jnp.int32, (BL, 1), 0) % L
    shift_set = sorted({(K - 1 - k) * cfg["dilation"]
                        for cfg in cfgs for k in range(K)} - {0})
    masks = {s: (t_loc >= s).astype(jnp.float32) for s in shift_set}

    def shift_rows(x, s):
        # y[t] = x[t - s] within each batch element, zeros for t_local < s.
        if s == 0:
            return x
        return pltpu.roll(x, shift=s, axis=0) * masks[s]

    def causal_conv(hin, w_off, b_off, c_in, c_out, d):
        # Fuse the K taps into a single matmul: (BL, K*c_in) @ (K*c_in, c_out).
        xs = [shift_rows(hin, (K - 1 - k) * d) for k in range(K)]
        x_cat = jnp.concatenate(xs, axis=1).astype(jnp.bfloat16)
        w = slab_ref[w_off:w_off + K * c_in, 0:c_out]                 # bf16, static slice
        b = slab_ref[b_off:b_off + 1, 0:c_out].astype(jnp.float32)    # (1, c_out)
        return jnp.dot(x_cat, w, preferred_element_type=jnp.float32) + b

    h = x_ref[...].astype(jnp.float32)                                # (BL, Cin)

    for cfg in cfgs:                                                  # static structure
        d, c_in, c_out = cfg["dilation"], cfg["cin"], cfg["cout"]
        out = jnp.maximum(causal_conv(h, cfg["w1"], cfg["b1"], c_in, c_out, d), 0.0)
        # TODO(synk): nn.Dropout omitted (eval-mode identity).
        out = jnp.maximum(causal_conv(out, cfg["w2"], cfg["b2"], c_out, c_out, d), 0.0)
        if cfg["down"] is not None:                                   # 1x1 conv residual
            wd_off, bd_off = cfg["down"]
            wd = slab_ref[wd_off:wd_off + c_in, 0:c_out]
            bd = slab_ref[bd_off:bd_off + 1, 0:c_out].astype(jnp.float32)
            res = jnp.dot(h.astype(jnp.bfloat16), wd,
                          preferred_element_type=jnp.float32) + bd
        else:
            res = h
        h = jnp.maximum(out + res, 0.0)                               # TemporalBlock ReLU

    h = jnp.maximum(h, 0.0)                                           # model-level self.act

    # Final nn.Linear over the time axis: one block-diagonal matmul for the whole
    # batch tile (contraction depth = B*L = 128), weights on the left.
    y_full = jnp.dot(wbig_ref[...], h.astype(jnp.bfloat16),
                     preferred_element_type=jnp.float32)              # (O*B, C_last)
    # Re-pack to a lane-dense (B, O*C_last) slab: y[b, o*C + c] = y_full[o*B + b, c].
    y = jnp.concatenate([y_full[o * B:(o + 1) * B, :] for o in range(O)], axis=1)
    o_ref[...] = y + bfin_ref[...]


# --------------------------------------------------------------------------
# Wrapper
# --------------------------------------------------------------------------
def tcn_model_forward(x_ncl, slab, w_big, bias_fin, cfgs, dims):
    N, cin, L = x_ncl.shape
    B, O, c_last = dims["B"], dims["O"], dims["C_LAST"]
    assert L == dims["L"]

    n_pad = pl.cdiv(N, B) * B
    x_nlc = jnp.transpose(x_ncl, (0, 2, 1))
    if n_pad != N:
        x_nlc = jnp.concatenate(
            [x_nlc, jnp.zeros((n_pad - N, L, cin), x_nlc.dtype)], axis=0)
    x_flat = x_nlc.astype(jnp.bfloat16).reshape(n_pad * L, cin)

    kernel = functools.partial(_tcn_kernel, cfgs, dims)
    out = pl.pallas_call(
        kernel,
        out_shape=jax.ShapeDtypeStruct((n_pad, O * c_last), jnp.float32),
        grid=(n_pad // B,),
        in_specs=[
            pl.BlockSpec((B * L, cin), lambda n: (n, 0)),
            pl.BlockSpec(slab.shape, lambda n: (0, 0)),      # resident weights
            pl.BlockSpec(w_big.shape, lambda n: (0, 0)),
            pl.BlockSpec(bias_fin.shape, lambda n: (0, 0)),
        ],
        out_specs=pl.BlockSpec((B, O * c_last), lambda n: (n, 0)),
        compiler_params=pltpu.CompilerParams(dimension_semantics=("parallel",)),
    )(x_flat, slab, w_big, bias_fin)

    # Layout plumbing outside the kernel: (N, O*C) -> (N, C_last, O) (PyTorch shape).
    y = out[:N].reshape(N, O, c_last)
    return jnp.transpose(y, (0, 2, 1))


# --------------------------------------------------------------------------
# Parameter init (weight_norm at init => effective weight == v) + packing
# --------------------------------------------------------------------------
def _q(x):
    # Round-trip through bf16 so kernel (bf16 storage) and f32 reference agree.
    return x.astype(jnp.bfloat16).astype(jnp.float32)


def init_params(key, input_size, hidden_sizes, output_size, kernel_size, scale=0.1):
    channels = list(hidden_sizes[:3])
    keys = iter(jax.random.split(key, 32))

    def rnd(shape):
        return _q(jax.random.normal(next(keys), shape, jnp.float32) * scale)

    torch_params = []
    cin = input_size
    for i, cout in enumerate(channels):
        d = 2 ** i
        p = {"w1": rnd((cout, cin, kernel_size)), "b1": rnd((cout,)),
             "w2": rnd((cout, cout, kernel_size)), "b2": rnd((cout,)),
             "down": None, "d": d}
        if cin != cout:
            p["down"] = (rnd((cout, cin, 1)), rnd((cout,)))
        torch_params.append(p)
        cin = cout
    wl = rnd((output_size, hidden_sizes[-1]))
    bl = rnd((output_size,))
    return torch_params, wl, bl


def pack_for_kernel(torch_params, wl, bl, b_tile, seq_len, output_size):
    """Pack all conv weights/biases into one bf16 slab + block-diag final linear."""
    width = max(p["w1"].shape[0] for p in torch_params)      # max Cout
    K = torch_params[0]["w1"].shape[2]
    rows, cfgs = [], []
    off = 0

    def push(mat):
        nonlocal off
        r, c = mat.shape
        r_pad = ((r + 7) // 8) * 8                           # sublane-aligned offsets
        buf = np.zeros((r_pad, width), np.float32)
        buf[:r, :c] = mat
        rows.append(buf)
        start = off
        off += r_pad
        return start

    for p in torch_params:
        w1, w2 = np.asarray(p["w1"]), np.asarray(p["w2"])
        cout, cin = w1.shape[0], w1.shape[1]
        # Matmul layout: W_cat[k*cin + ci, co] = w[co, ci, k]
        w1_cat = np.concatenate([w1[:, :, k].T for k in range(K)], axis=0)
        w2_cat = np.concatenate([w2[:, :, k].T for k in range(K)], axis=0)
        cfg = {"dilation": p["d"], "cin": cin, "cout": cout,
               "w1": push(w1_cat), "b1": push(np.asarray(p["b1"])[None, :]),
               "w2": push(w2_cat), "b2": push(np.asarray(p["b2"])[None, :]),
               "down": None}
        if p["down"] is not None:
            wd, bd = p["down"]
            cfg["down"] = (push(np.asarray(wd)[:, :, 0].T),
                           push(np.asarray(bd)[None, :]))
        cfgs.append(cfg)
    slab = jnp.asarray(np.concatenate(rows, axis=0), dtype=jnp.bfloat16)

    # Block-diagonal final linear: W_big[o*B + b, b*L + l] = wl[o, l].
    wl_np, bl_np = np.asarray(wl), np.asarray(bl)
    c_last = torch_params[-1]["w2"].shape[0]
    w_big = np.zeros((output_size * b_tile, b_tile * seq_len), np.float32)
    for o in range(output_size):
        for b in range(b_tile):
            w_big[o * b_tile + b, b * seq_len:(b + 1) * seq_len] = wl_np[o]
    bias_fin = np.repeat(bl_np, c_last)[None, :]             # (1, O*C_last)
    return (slab, jnp.asarray(w_big, jnp.bfloat16),
            jnp.asarray(bias_fin, jnp.float32), cfgs)


# --------------------------------------------------------------------------
# Pure-JAX reference (NCL layout, mirrors the PyTorch forward)
# --------------------------------------------------------------------------
def reference_forward(x_ncl, torch_params, wl, bl):
    def conv(x, w, b, dil, pad):
        xp = jnp.pad(x, ((0, 0), (0, 0), (pad, 0)))
        y = lax.conv_general_dilated(xp, w, window_strides=(1,), padding="VALID",
                                     rhs_dilation=(dil,),
                                     dimension_numbers=("NCH", "OIH", "NCH"))
        return y + b[None, :, None]

    h = x_ncl
    for p in torch_params:
        d = p["d"]
        P = (p["w1"].shape[2] - 1) * d
        out = jax.nn.relu(conv(h, p["w1"], p["b1"], d, P))
        out = jax.nn.relu(conv(out, p["w2"], p["b2"], d, P))
        if p["down"] is not None:
            wd, bd = p["down"]
            res = conv(h, wd, bd, 1, 0)
        else:
            res = h
        h = jax.nn.relu(out + res)
    h = jax.nn.relu(h)
    return jnp.einsum("ncl,ol->nco", h, wl) + bl[None, None, :]


if __name__ == "__main__":
    key = jax.random.PRNGKey(0)
    # nn.Linear(hidden_sizes[-1], output_size) acts on the time axis of the NCL
    # tensor, so L must equal hidden_sizes[-1] (as in the PyTorch module).
    N, input_size, L = 12, 8, 16
    hidden_sizes = [16, 16, 16]
    output_size = 4
    B_TILE = 8                                   # rows per grid step = B_TILE*L = 128

    k_x, k_p = jax.random.split(key)
    x = _q(jax.random.normal(k_x, (N, input_size, L), jnp.float32))   # PyTorch NCL input

    torch_params, wl, bl = init_params(k_p, input_size, hidden_sizes,
                                       output_size, KERNEL_SIZE)
    slab, w_big, bias_fin, cfgs = pack_for_kernel(
        torch_params, wl, bl, B_TILE, L, output_size)
    dims = {"B": B_TILE, "L": L, "O": output_size,
            "K": KERNEL_SIZE, "C_LAST": hidden_sizes[-1]}

    y = tcn_model_forward(x, slab, w_big, bias_fin, cfgs, dims)
    y = jax.block_until_ready(y)

    y_ref = reference_forward(x, torch_params, wl, bl)
    assert y.shape == (N, hidden_sizes[-1], output_size)
    # bf16 storage + bf16 MXU inputs (f32 accumulation) => loose-ish tolerance.
    np.testing.assert_allclose(np.asarray(y), np.asarray(y_ref), rtol=3e-2, atol=3e-2)
    print("KERNEL_OK")
</pallas_src>

<mosaic_0001>
module attributes {stable_mosaic.version = 11 : i64} {
  func.func @_tcn_kernel(%arg0: i32, %arg1: memref<128x8xbf16, #tpu.memory_space<vmem>>, %arg2: memref<328x16xbf16, #tpu.memory_space<vmem>>, %arg3: memref<32x128xbf16, #tpu.memory_space<vmem>>, %arg4: memref<1x64xf32, #tpu.memory_space<vmem>>, %arg5: memref<8x64xf32, #tpu.memory_space<vmem>>) attributes {dimension_semantics = [#tpu.dimension_semantics<parallel>], iteration_bounds = array<i64: 2>, scalar_prefetch = 0 : i64, scratch_operands = 0 : i64, tpu.core_type = #tpu.core_type<tc>, window_params = [{transform_indices = @transform_0, window_bounds = array<i64: 128, 8>}, {pipeline_mode = #tpu.pipeline_mode<synchronous>, transform_indices = @transform_1, window_bounds = array<i64: 328, 16>}, {pipeline_mode = #tpu.pipeline_mode<synchronous>, transform_indices = @transform_2, window_bounds = array<i64: 32, 128>}, {pipeline_mode = #tpu.pipeline_mode<synchronous>, transform_indices = @transform_3, window_bounds = array<i64: 1, 64>}, {transform_indices = @transform_4, window_bounds = array<i64: 8, 64>}]} {
    %0 = tpu.iota {dimensions = array<i32: 0>} : vector<128x1xi32>
    %c16_i32 = arith.constant 16 : i32
    %c0_i32 = arith.constant 0 : i32
    %1 = arith.cmpi eq, %c16_i32, %c0_i32 : i32
    %c1_i32 = arith.constant 1 : i32
    %2 = arith.select %1, %c1_i32, %c16_i32 : i32
    %3 = vector.broadcast %2 : i32 to vector<128x1xi32>
    %4 = arith.remsi %0, %3 : vector<128x1xi32>
    %c0_i32_0 = arith.constant 0 : i32
    %5 = vector.broadcast %c0_i32_0 : i32 to vector<128x1xi32>
    %6 = arith.cmpi ne, %4, %5 : vector<128x1xi32>
    %c0_i32_1 = arith.constant 0 : i32
    %7 = vector.broadcast %c0_i32_1 : i32 to vector<128x1xi32>
    %8 = arith.cmpi slt, %4, %7 : vector<128x1xi32>
    %c0_i32_2 = arith.constant 0 : i32
    %9 = arith.cmpi slt, %2, %c0_i32_2 : i32
    %10 = vector.broadcast %9 : i1 to vector<128x1xi1>
    %11 = vector.broadcast %10 : vector<128x1xi1> to vector<128x1xi1>
    %12 = arith.xori %8, %11 : vector<128x1xi1>
    %13 = arith.andi %12, %6 : vector<128x1xi1>
    %14 = vector.broadcast %2 : i32 to vector<128x1xi32>
    %15 = arith.addi %4, %14 : vector<128x1xi32>
    %16 = arith.select %13, %15, %4 : vector<128x1xi1>, vector<128x1xi32>
    %c1_i32_3 = arith.constant 1 : i32
    %17 = vector.broadcast %c1_i32_3 : i32 to vector<128x1xi32>
    %18 = arith.cmpi sge, %16, %17 : vector<128x1xi32>
    %19 = arith.extui %18 : vector<128x1xi1> to vector<128x1xi32>
    %20 = arith.sitofp %19 : vector<128x1xi32> to vector<128x1xf32>
    %c2_i32 = arith.constant 2 : i32
    %21 = vector.broadcast %c2_i32 : i32 to vector<128x1xi32>
    %22 = arith.cmpi sge, %16, %21 : vector<128x1xi32>
    %23 = arith.extui %22 : vector<128x1xi1> to vector<128x1xi32>
    %24 = arith.sitofp %23 : vector<128x1xi32> to vector<128x1xf32>
    %c4_i32 = arith.constant 4 : i32
    %25 = vector.broadcast %c4_i32 : i32 to vector<128x1xi32>
    %26 = arith.cmpi sge, %16, %25 : vector<128x1xi32>
    %27 = arith.extui %26 : vector<128x1xi1> to vector<128x1xi32>
    %28 = arith.sitofp %27 : vector<128x1xi32> to vector<128x1xf32>
    %c8_i32 = arith.constant 8 : i32
    %29 = vector.broadcast %c8_i32 : i32 to vector<128x1xi32>
    %30 = arith.cmpi sge, %16, %29 : vector<128x1xi32>
    %31 = arith.extui %30 : vector<128x1xi1> to vector<128x1xi32>
    %32 = arith.sitofp %31 : vector<128x1xi32> to vector<128x1xf32>
    %c0 = arith.constant 0 : index
    %c0_4 = arith.constant 0 : index
    %33 = vector.load %arg1[%c0, %c0_4] : memref<128x8xbf16, #tpu.memory_space<vmem>>, vector<128x8xbf16>
    %34 = arith.extf %33 : vector<128x8xbf16> to vector<128x8xf32>
    %c2_i32_5 = arith.constant 2 : i32
    %35 = tpu.dynamic_rotate %34 by %c2_i32_5 dim 0 : vector<128x8xf32>, i32 -> vector<128x8xf32>
    %36 = vector.broadcast %24 : vector<128x1xf32> to vector<128x8xf32>
    %37 = arith.mulf %35, %36 : vector<128x8xf32>
    %c1_i32_6 = arith.constant 1 : i32
    %38 = tpu.dynamic_rotate %34 by %c1_i32_6 dim 0 : vector<128x8xf32>, i32 -> vector<128x8xf32>
    %39 = vector.broadcast %20 : vector<128x1xf32> to vector<128x8xf32>
    %40 = arith.mulf %38, %39 : vector<128x8xf32>
    %41 = tpu.concatenate %37, %40, %34 in 1 : vector<128x8xf32>, vector<128x8xf32>, vector<128x8xf32> -> vector<128x24xf32>
    %42 = arith.truncf %41 : vector<128x24xf32> to vector<128x24xbf16>
    %c0_7 = arith.constant 0 : index
    %c0_8 = arith.constant 0 : index
    %43 = vector.load %arg2[%c0_7, %c0_8] : memref<328x16xbf16, #tpu.memory_space<vmem>>, vector<24x16xbf16>
    %c24 = arith.constant 24 : index
    %c0_9 = arith.constant 0 : index
    %44 = vector.load %arg2[%c24, %c0_9] : memref<328x16xbf16, #tpu.memory_space<vmem>>, vector<1x16xbf16>
    %45 = arith.extf %44 : vector<1x16xbf16> to vector<1x16xf32>
    %cst = arith.constant dense<0.000000e+00> : vector<128x16xf32>
    %46 = tpu.matmul %42, %43, %cst {dimension_numbers = #tpu.dot_dimension_numbers<[1], [0], [0], [1], [0, 0, 1, 1], [], []>} : vector<128x24xbf16>, vector<24x16xbf16>, vector<128x16xf32> -> vector<128x16xf32>
    %47 = vector.broadcast %45 : vector<1x16xf32> to vector<128x16xf32>
    %48 = arith.addf %46, %47 : vector<128x16xf32>
    %cst_10 = arith.constant 0.000000e+00 : f32
    %49 = vector.broadcast %cst_10 : f32 to vector<128x16xf32>
    %50 = arith.maximumf %48, %49 : vector<128x16xf32>
    %c2_i32_11 = arith.constant 2 : i32
    %51 = tpu.dynamic_rotate %50 by %c2_i32_11 dim 0 : vector<128x16xf32>, i32 -> vector<128x16xf32>
    %52 = vector.broadcast %24 : vector<128x1xf32> to vector<128x16xf32>
    %53 = arith.mulf %51, %52 : vector<128x16xf32>
    %c1_i32_12 = arith.constant 1 : i32
    %54 = tpu.dynamic_rotate %50 by %c1_i32_12 dim 0 : vector<128x16xf32>, i32 -> vector<128x16xf32>
    %55 = vector.broadcast %20 : vector<128x1xf32> to vector<128x16xf32>
    %56 = arith.mulf %54, %55 : vector<128x16xf32>
    %57 = tpu.concatenate %53, %56, %50 in 1 : vector<128x16xf32>, vector<128x16xf32>, vector<128x16xf32> -> vector<128x48xf32>
    %58 = arith.truncf %57 : vector<128x48xf32> to vector<128x48xbf16>
    %c32 = arith.constant 32 : index
    %c0_13 = arith.constant 0 : index
    %59 = vector.load %arg2[%c32, %c0_13] : memref<328x16xbf16, #tpu.memory_space<vmem>>, vector<48x16xbf16>
    %c80 = arith.constant 80 : index
    %c0_14 = arith.constant 0 : index
    %60 = vector.load %arg2[%c80, %c0_14] : memref<328x16xbf16, #tpu.memory_space<vmem>>, vector<1x16xbf16>
    %61 = arith.extf %60 : vector<1x16xbf16> to vector<1x16xf32>
    %cst_15 = arith.constant dense<0.000000e+00> : vector<128x16xf32>
    %62 = tpu.matmul %58, %59, %cst_15 {dimension_numbers = #tpu.dot_dimension_numbers<[1], [0], [0], [1], [0, 0, 1, 1], [], []>} : vector<128x48xbf16>, vector<48x16xbf16>, vector<128x16xf32> -> vector<128x16xf32>
    %63 = vector.broadcast %61 : vector<1x16xf32> to vector<128x16xf32>
    %64 = arith.addf %62, %63 : vector<128x16xf32>
    %cst_16 = arith.constant 0.000000e+00 : f32
    %65 = vector.broadcast %cst_16 : f32 to vector<128x16xf32>
    %66 = arith.maximumf %64, %65 : vector<128x16xf32>
    %c88 = arith.constant 88 : index
    %c0_17 = arith.constant 0 : index
    %67 = vector.load %arg2[%c88, %c0_17] : memref<328x16xbf16, #tpu.memory_space<vmem>>, vector<8x16xbf16>
    %c96 = arith.constant 96 : index
    %c0_18 = arith.constant 0 : index
    %68 = vector.load %arg2[%c96, %c0_18] : memref<328x16xbf16, #tpu.memory_space<vmem>>, vector<1x16xbf16>
    %69 = arith.extf %68 : vector<1x16xbf16> to vector<1x16xf32>
    %70 = arith.truncf %34 : vector<128x8xf32> to vector<128x8xbf16>
    %cst_19 = arith.constant dense<0.000000e+00> : vector<128x16xf32>
    %71 = tpu.matmul %70, %67, %cst_19 {dimension_numbers = #tpu.dot_dimension_numbers<[1], [0], [0], [1], [0, 0, 1, 1], [], []>} : vector<128x8xbf16>, vector<8x16xbf16>, vector<128x16xf32> -> vector<128x16xf32>
    %72 = vector.broadcast %69 : vector<1x16xf32> to vector<128x16xf32>
    %73 = arith.addf %71, %72 : vector<128x16xf32>
    %74 = arith.addf %66, %73 : vector<128x16xf32>
    %cst_20 = arith.constant 0.000000e+00 : f32
    %75 = vector.broadcast %cst_20 : f32 to vector<128x16xf32>
    %76 = arith.maximumf %74, %75 : vector<128x16xf32>
    %c4_i32_21 = arith.constant 4 : i32
    %77 = tpu.dynamic_rotate %76 by %c4_i32_21 dim 0 : vector<128x16xf32>, i32 -> vector<128x16xf32>
    %78 = vector.broadcast %28 : vector<128x1xf32> to vector<128x16xf32>
    %79 = arith.mulf %77, %78 : vector<128x16xf32>
    %c2_i32_22 = arith.constant 2 : i32
    %80 = tpu.dynamic_rotate %76 by %c2_i32_22 dim 0 : vector<128x16xf32>, i32 -> vector<128x16xf32>
    %81 = vector.broadcast %24 : vector<128x1xf32> to vector<128x16xf32>
    %82 = arith.mulf %80, %81 : vector<128x16xf32>
    %83 = tpu.concatenate %79, %82, %76 in 1 : vector<128x16xf32>, vector<128x16xf32>, vector<128x16xf32> -> vector<128x48xf32>
    %84 = arith.truncf %83 : vector<128x48xf32> to vector<128x48xbf16>
    %c104 = arith.constant 104 : index
    %c0_23 = arith.constant 0 : index
    %85 = vector.load %arg2[%c104, %c0_23] : memref<328x16xbf16, #tpu.memory_space<vmem>>, vector<48x16xbf16>
    %c152 = arith.constant 152 : index
    %c0_24 = arith.constant 0 : index
    %86 = vector.load %arg2[%c152, %c0_24] : memref<328x16xbf16, #tpu.memory_space<vmem>>, vector<1x16xbf16>
    %87 = arith.extf %86 : vector<1x16xbf16> to vector<1x16xf32>
    %cst_25 = arith.constant dense<0.000000e+00> : vector<128x16xf32>
    %88 = tpu.matmul %84, %85, %cst_25 {dimension_numbers = #tpu.dot_dimension_numbers<[1], [0], [0], [1], [0, 0, 1, 1], [], []>} : vector<128x48xbf16>, vector<48x16xbf16>, vector<128x16xf32> -> vector<128x16xf32>
    %89 = vector.broadcast %87 : vector<1x16xf32> to vector<128x16xf32>
    %90 = arith.addf %88, %89 : vector<128x16xf32>
    %cst_26 = arith.constant 0.000000e+00 : f32
    %91 = vector.broadcast %cst_26 : f32 to vector<128x16xf32>
    %92 = arith.maximumf %90, %91 : vector<128x16xf32>
    %c4_i32_27 = arith.constant 4 : i32
    %93 = tpu.dynamic_rotate %92 by %c4_i32_27 dim 0 : vector<128x16xf32>, i32 -> vector<128x16xf32>
    %94 = vector.broadcast %28 : vector<128x1xf32> to vector<128x16xf32>
    %95 = arith.mulf %93, %94 : vector<128x16xf32>
    %c2_i32_28 = arith.constant 2 : i32
    %96 = tpu.dynamic_rotate %92 by %c2_i32_28 dim 0 : vector<128x16xf32>, i32 -> vector<128x16xf32>
    %97 = vector.broadcast %24 : vector<128x1xf32> to vector<128x16xf32>
    %98 = arith.mulf %96, %97 : vector<128x16xf32>
    %99 = tpu.concatenate %95, %98, %92 in 1 : vector<128x16xf32>, vector<128x16xf32>, vector<128x16xf32> -> vector<128x48xf32>
    %100 = arith.truncf %99 : vector<128x48xf32> to vector<128x48xbf16>
    %c160 = arith.constant 160 : index
    %c0_29 = arith.constant 0 : index
    %101 = vector.load %arg2[%c160, %c0_29] : memref<328x16xbf16, #tpu.memory_space<vmem>>, vector<48x16xbf16>
    %c208 = arith.constant 208 : index
    %c0_30 = arith.constant 0 : index
    %102 = vector.load %arg2[%c208, %c0_30] : memref<328x16xbf16, #tpu.memory_space<vmem>>, vector<1x16xbf16>
    %103 = arith.extf %102 : vector<1x16xbf16> to vector<1x16xf32>
    %cst_31 = arith.constant dense<0.000000e+00> : vector<128x16xf32>
    %104 = tpu.matmul %100, %101, %cst_31 {dimension_numbers = #tpu.dot_dimension_numbers<[1], [0], [0], [1], [0, 0, 1, 1], [], []>} : vector<128x48xbf16>, vector<48x16xbf16>, vector<128x16xf32> -> vector<128x16xf32>
    %105 = vector.broadcast %103 : vector<1x16xf32> to vector<128x16xf32>
    %106 = arith.addf %104, %105 : vector<128x16xf32>
    %cst_32 = arith.constant 0.000000e+00 : f32
    %107 = vector.broadcast %cst_32 : f32 to vector<128x16xf32>
    %108 = arith.maximumf %106, %107 : vector<128x16xf32>
    %109 = arith.addf %108, %76 : vector<128x16xf32>
    %cst_33 = arith.constant 0.000000e+00 : f32
    %110 = vector.broadcast %cst_33 : f32 to vector<128x16xf32>
    %111 = arith.maximumf %109, %110 : vector<128x16xf32>
    %c8_i32_34 = arith.constant 8 : i32
    %112 = tpu.dynamic_rotate %111 by %c8_i32_34 dim 0 : vector<128x16xf32>, i32 -> vector<128x16xf32>
    %113 = vector.broadcast %32 : vector<128x1xf32> to vector<128x16xf32>
    %114 = arith.mulf %112, %113 : vector<128x16xf32>
    %c4_i32_35 = arith.constant 4 : i32
    %115 = tpu.dynamic_rotate %111 by %c4_i32_35 dim 0 : vector<128x16xf32>, i32 -> vector<128x16xf32>
    %116 = vector.broadcast %28 : vector<128x1xf32> to vector<128x16xf32>
    %117 = arith.mulf %115, %116 : vector<128x16xf32>
    %118 = tpu.concatenate %114, %117, %111 in 1 : vector<128x16xf32>, vector<128x16xf32>, vector<128x16xf32> -> vector<128x48xf32>
    %119 = arith.truncf %118 : vector<128x48xf32> to vector<128x48xbf16>
    %c216 = arith.constant 216 : index
    %c0_36 = arith.constant 0 : index
    %120 = vector.load %arg2[%c216, %c0_36] : memref<328x16xbf16, #tpu.memory_space<vmem>>, vector<48x16xbf16>
    %c264 = arith.constant 264 : index
    %c0_37 = arith.constant 0 : index
    %121 = vector.load %arg2[%c264, %c0_37] : memref<328x16xbf16, #tpu.memory_space<vmem>>, vector<1x16xbf16>
    %122 = arith.extf %121 : vector<1x16xbf16> to vector<1x16xf32>
    %cst_38 = arith.constant dense<0.000000e+00> : vector<128x16xf32>
    %123 = tpu.matmul %119, %120, %cst_38 {dimension_numbers = #tpu.dot_dimension_numbers<[1], [0], [0], [1], [0, 0, 1, 1], [], []>} : vector<128x48xbf16>, vector<48x16xbf16>, vector<128x16xf32> -> vector<128x16xf32>
    %124 = vector.broadcast %122 : vector<1x16xf32> to vector<128x16xf32>
    %125 = arith.addf %123, %124 : vector<128x16xf32>
    %cst_39 = arith.constant 0.000000e+00 : f32
    %126 = vector.broadcast %cst_39 : f32 to vector<128x16xf32>
    %127 = arith.maximumf %125, %126 : vector<128x16xf32>
    %c8_i32_40 = arith.constant 8 : i32
    %128 = tpu.dynamic_rotate %127 by %c8_i32_40 dim 0 : vector<128x16xf32>, i32 -> vector<128x16xf32>
    %129 = vector.broadcast %32 : vector<128x1xf32> to vector<128x16xf32>
    %130 = arith.mulf %128, %129 : vector<128x16xf32>
    %c4_i32_41 = arith.constant 4 : i32
    %131 = tpu.dynamic_rotate %127 by %c4_i32_41 dim 0 : vector<128x16xf32>, i32 -> vector<128x16xf32>
    %132 = vector.broadcast %28 : vector<128x1xf32> to vector<128x16xf32>
    %133 = arith.mulf %131, %132 : vector<128x16xf32>
    %134 = tpu.concatenate %130, %133, %127 in 1 : vector<128x16xf32>, vector<128x16xf32>, vector<128x16xf32> -> vector<128x48xf32>
    %135 = arith.truncf %134 : vector<128x48xf32> to vector<128x48xbf16>
    %c272 = arith.constant 272 : index
    %c0_42 = arith.constant 0 : index
    %136 = vector.load %arg2[%c272, %c0_42] : memref<328x16xbf16, #tpu.memory_space<vmem>>, vector<48x16xbf16>
    %c320 = arith.constant 320 : index
    %c0_43 = arith.constant 0 : index
    %137 = vector.load %arg2[%c320, %c0_43] : memref<328x16xbf16, #tpu.memory_space<vmem>>, vector<1x16xbf16>
    %138 = arith.extf %137 : vector<1x16xbf16> to vector<1x16xf32>
    %cst_44 = arith.constant dense<0.000000e+00> : vector<128x16xf32>
    %139 = tpu.matmul %135, %136, %cst_44 {dimension_numbers = #tpu.dot_dimension_numbers<[1], [0], [0], [1], [0, 0, 1, 1], [], []>} : vector<128x48xbf16>, vector<48x16xbf16>, vector<128x16xf32> -> vector<128x16xf32>
    %140 = vector.broadcast %138 : vector<1x16xf32> to vector<128x16xf32>
    %141 = arith.addf %139, %140 : vector<128x16xf32>
    %cst_45 = arith.constant 0.000000e+00 : f32
    %142 = vector.broadcast %cst_45 : f32 to vector<128x16xf32>
    %143 = arith.maximumf %141, %142 : vector<128x16xf32>
    %144 = arith.addf %143, %111 : vector<128x16xf32>
    %cst_46 = arith.constant 0.000000e+00 : f32
    %145 = vector.broadcast %cst_46 : f32 to vector<128x16xf32>
    %146 = arith.maximumf %144, %145 : vector<128x16xf32>
    %cst_47 = arith.constant 0.000000e+00 : f32
    %147 = vector.broadcast %cst_47 : f32 to vector<128x16xf32>
    %148 = arith.maximumf %146, %147 : vector<128x16xf32>
    %c0_48 = arith.constant 0 : index
    %c0_49 = arith.constant 0 : index
    %149 = vector.load %arg3[%c0_48, %c0_49] : memref<32x128xbf16, #tpu.memory_space<vmem>>, vector<32x128xbf16>
    %150 = arith.truncf %148 : vector<128x16xf32> to vector<128x16xbf16>
    %cst_50 = arith.constant dense<0.000000e+00> : vector<32x16xf32>
    %151 = tpu.matmul %149, %150, %cst_50 {dimension_numbers = #tpu.dot_dimension_numbers<[1], [0], [0], [1], [0, 0, 1, 1], [], []>} : vector<32x128xbf16>, vector<128x16xbf16>, vector<32x16xf32> -> vector<32x16xf32>
    %152 = vector.extract_strided_slice %151 {offsets = [0, 0], sizes = [8, 16], strides = [1, 1]} : vector<32x16xf32> to vector<8x16xf32>
    %153 = vector.extract_strided_slice %151 {offsets = [8, 0], sizes = [8, 16], strides = [1, 1]} : vector<32x16xf32> to vector<8x16xf32>
    %154 = vector.extract_strided_slice %151 {offsets = [16, 0], sizes = [8, 16], strides = [1, 1]} : vector<32x16xf32> to vector<8x16xf32>
    %155 = vector.extract_strided_slice %151 {offsets = [24, 0], sizes = [8, 16], strides = [1, 1]} : vector<32x16xf32> to vector<8x16xf32>
    %156 = tpu.concatenate %152, %153, %154, %155 in 1 : vector<8x16xf32>, vector<8x16xf32>, vector<8x16xf32>, vector<8x16xf32> -> vector<8x64xf32>
    %c0_51 = arith.constant 0 : index
    %c0_52 = arith.constant 0 : index
    %157 = vector.load %arg4[%c0_51, %c0_52] : memref<1x64xf32, #tpu.memory_space<vmem>>, vector<1x64xf32>
    %158 = vector.broadcast %157 : vector<1x64xf32> to vector<8x64xf32>
    %159 = arith.addf %156, %158 : vector<8x64xf32>
    %c0_53 = arith.constant 0 : index
    %c0_54 = arith.constant 0 : index
    %160 = vector.load %arg5[%c0_53, %c0_54] : memref<8x64xf32, #tpu.memory_space<vmem>>, vector<8x64xf32>
    tpu.vector_store %arg5[%c0_53, %c0_54], %159 {strides = array<i32>} : memref<8x64xf32, #tpu.memory_space<vmem>>, vector<8x64xf32>,
    return
  }
  func.func @transform_0(%arg0: i32) -> (i32, i32) {
    %c0_i32 = arith.constant 0 : i32
    %c0_i32_0 = arith.constant 0 : i32
    return %arg0, %c0_i32 : i32, i32
  }
  func.func @transform_1(%arg0: i32) -> (i32, i32) {
    %c0_i32 = arith.constant 0 : i32
    %c0_i32_0 = arith.constant 0 : i32
    %c0_i32_1 = arith.constant 0 : i32
    return %c0_i32, %c0_i32_0 : i32, i32
  }
  func.func @transform_2(%arg0: i32) -> (i32, i32) {
    %c0_i32 = arith.constant 0 : i32
    %c0_i32_0 = arith.constant 0 : i32
    %c0_i32_1 = arith.constant 0 : i32
    return %c0_i32, %c0_i32_0 : i32, i32
  }
  func.func @transform_3(%arg0: i32) -> (i32, i32) {
    %c0_i32 = arith.constant 0 : i32
    %c0_i32_0 = arith.constant 0 : i32
    %c0_i32_1 = arith.constant 0 : i32
    return %c0_i32, %c0_i32_0 : i32, i32
  }
  func.func @transform_4(%arg0: i32) -> (i32, i32) {
    %c0_i32 = arith.constant 0 : i32
    %c0_i32_0 = arith.constant 0 : i32
    return %arg0, %c0_i32 : i32, i32
  }
}

</mosaic_0001>

<llo_original>
// kernel: tpu_custom_call.1
$region0: #{tpu_custom_call.1}
  #allocation0 [shape = 'u32[]', space=smem, size = 0x4, offset = 0x4, fixed_abs, tag = 'smem constant byte address 0x4 - core index']
  #allocation1 [shape = 'u32[72,128]{1,0:T(1,128)}', space=vmem, size = 0x9000, scoped, tag = 'internal scratch']
  %s0 = inlined_call_operand.vmem [shape: bf16[256,8], index: 0, kind: input, shape index: {}]
  %s1 = inlined_call_operand.vmem [shape: bf16[328,16], index: 1, kind: input, shape index: {}]
  %s2 = inlined_call_operand.vmem [shape: bf16[32,128], index: 2, kind: input, shape index: {}]
  %s3 = inlined_call_operand.vmem [shape: f32[1,64], index: 3, kind: input, shape index: {}]
  %s4 = inlined_call_operand.hbm [shape: f32[16,64], index: 4, kind: output, shape index: {}]
  %s5 = sld [smem:[#allocation0]]
  $region49: #{tpu_custom_call.1} parent=0
    _
  %s7 = ssub.s32 1, %s5
  %s8 = scalar_select 0, %s7, %s5
  $region1: #{tpu_custom_call.1} parent=0
    #allocation2 [shape = 'u8[8192]{0}', space=vmem, size = 0x2000, scoped, tag = 'output window, operand 0']
    #allocation3 [shape = 's32[2]{0}', space=sflag, size = 0x8, scoped, tag = 'scoped memory for tpu_custom_call.1']
    %9 = vsyncpa [#allocation3], 0
    %s10 = scalar_lea.sflag [#allocation3], 1
    %11 = vsyncpa %s10, 0
    loop: start=0, step=1, limit=4
    $region2: #{tpu_custom_call.1} parent=1 // loop_pre_header
      _
    $region3: #{tpu_custom_call.1} parent=1 // loop_header
      %s13 = sphi 0, %s17
      %p14 = scmp.ge.s32.totalorder %s13, 4
      %s23 = sphi 0, %s25
      %s26 = sphi 0, %s23
      %s27 = sphi 0, %s26
      %s43 = sphi 0, %s27
      %s47 = sphi 0, %s47
      %s49 = sphi 0, %s47
      %s50 = sphi 0, %s49
      %s64 = sphi 0, %s50
      %s68 = sphi 0, %s68
      %s70 = sphi 0, %s68
      %s71 = sphi 0, %s70
      %s85 = sphi 0, %s71
      %s89 = sphi 0, %s89
      %s91 = sphi 0, %s89
      %s92 = sphi 0, %s91
      %s106 = sphi 0, %s92
      %s112 = sphi 0, %s114
      %s115 = sphi 0, %s112
      %s116 = sphi 0, %s115
      %s132 = sphi 0, %s116
    $region4: #{tpu_custom_call.1} parent=1 // loop_header_branch
      %16 = sbr.rel (%p14) target = $region8
    $region5: #{tpu_custom_call.1} parent=1 // loop_body
      %s18 = ssub.s32 %s13, 1
      %s19 = ssub.s32 %s13, 2
      %s20 = sadd.s32 %s13, 1
      %s21 = ssub.s32 %s13, %s20
      %p22 = scmp.eq.s32.totalorder %s21, 0
      %s24 = sadd.s32 %s23, 1
      %s25 = scalar_select %p22, %s23, %s24
      %p28 = pneg %p22
      %p29 = scmp.eq.s32.totalorder %s13, 1
      %p30 = por %p28, %p29
      %p31 = scmp.ne.s32.totalorder %s23, %s26
      %p32 = scmp.eq.s32.totalorder %s13, 0
      %p33 = por %p31, %p32
      %p34 = scmp.ne.s32.totalorder %s23, %s26
      %p35 = scmp.eq.s32.totalorder %s18, 1
      %p36 = por %p34, %p35
      %p37 = scmp.ne.s32.totalorder %s26, %s27
      %p38 = scmp.eq.s32.totalorder %s18, 0
      %p39 = por %p37, %p38
      %p40 = scmp.ne.s32.totalorder %s26, %s27
      %p41 = scmp.eq.s32.totalorder %s19, 1
      %p42 = por %p40, %p41
      %p44 = scmp.ne.s32.totalorder %s27, %s43
      %p45 = scmp.eq.s32.totalorder %s19, 0
      %p46 = por %p44, %p45
      %s48 = sadd.s32 %s47, 1
      %p51 = scmp.eq.s32.totalorder %s13, 1
      %p52 = scmp.ne.s32.totalorder %s47, %s49
      %p53 = scmp.eq.s32.totalorder %s13, 0
      %p54 = por %p52, %p53
      %p55 = scmp.ne.s32.totalorder %s47, %s49
      %p56 = scmp.eq.s32.totalorder %s18, 1
      %p57 = por %p55, %p56
      %p58 = scmp.ne.s32.totalorder %s49, %s50
      %p59 = scmp.eq.s32.totalorder %s18, 0
      %p60 = por %p58, %p59
      %p61 = scmp.ne.s32.totalorder %s49, %s50
      %p62 = scmp.eq.s32.totalorder %s19, 1
      %p63 = por %p61, %p62
      %p65 = scmp.ne.s32.totalorder %s50, %s64
      %p66 = scmp.eq.s32.totalorder %s19, 0
      %p67 = por %p65, %p66
      %s69 = sadd.s32 %s68, 1
      %p72 = scmp.eq.s32.totalorder %s13, 1
      %p73 = scmp.ne.s32.totalorder %s68, %s70
      %p74 = scmp.eq.s32.totalorder %s13, 0
      %p75 = por %p73, %p74
      %p76 = scmp.ne.s32.totalorder %s68, %s70
      %p77 = scmp.eq.s32.totalorder %s18, 1
      %p78 = por %p76, %p77
      %p79 = scmp.ne.s32.totalorder %s70, %s71
      %p80 = scmp.eq.s32.totalorder %s18, 0
      %p81 = por %p79, %p80
      %p82 = scmp.ne.s32.totalorder %s70, %s71
      %p83 = scmp.eq.s32.totalorder %s19, 1
      %p84 = por %p82, %p83
      %p86 = scmp.ne.s32.totalorder %s71, %s85
      %p87 = scmp.eq.s32.totalorder %s19, 0
      %p88 = por %p86, %p87
      %s90 = sadd.s32 %s89, 1
      %p93 = scmp.eq.s32.totalorder %s13, 1
      %p94 = scmp.ne.s32.totalorder %s89, %s91
      %p95 = scmp.eq.s32.totalorder %s13, 0
      %p96 = por %p94, %p95
      %p97 = scmp.ne.s32.totalorder %s89, %s91
      %p98 = scmp.eq.s32.totalorder %s18, 1
      %p99 = por %p97, %p98
      %p100 = scmp.ne.s32.totalorder %s91, %s92
      %p101 = scmp.eq.s32.totalorder %s18, 0
      %p102 = por %p100, %p101
      %p103 = scmp.ne.s32.totalorder %s91, %s92
      %p104 = scmp.eq.s32.totalorder %s19, 1
      %p105 = por %p103, %p104
      %p107 = scmp.ne.s32.totalorder %s92, %s106
      %p108 = scmp.eq.s32.totalorder %s19, 0
      %p109 = por %p107, %p108
      %s110 = ssub.s32 %s13, %s20
      %p111 = scmp.eq.s32.totalorder %s110, 0
      %s113 = sadd.s32 %s112, 1
      %s114 = scalar_select %p111, %s112, %s113
      %p117 = pneg %p111
      %p118 = scmp.eq.s32.totalorder %s13, 1
      %p119 = por %p117, %p118
      %p120 = scmp.ne.s32.totalorder %s112, %s115
      %p121 = scmp.eq.s32.totalorder %s13, 0
      %p122 = por %p120, %p121
      %p123 = scmp.ne.s32.totalorder %s112, %s115
      %p124 = scmp.eq.s32.totalorder %s18, 1
      %p125 = por %p123, %p124
      %p126 = scmp.ne.s32.totalorder %s115, %s116
      %p127 = scmp.eq.s32.totalorder %s18, 0
      %p128 = por %p126, %p127
      %p129 = scmp.ne.s32.totalorder %s115, %s116
      %p130 = scmp.eq.s32.totalorder %s19, 1
      %p131 = por %p129, %p130
      %p133 = scmp.ne.s32.totalorder %s116, %s132
      %p134 = scmp.eq.s32.totalorder %s19, 0
      %p135 = por %p133, %p134
      %p136 = scmp.le.s32.totalorder 1, %s13
      %p137 = scmp.lt.s32.totalorder %s13, 3
      %p138 = pnand %p136, %p137
      %p139 = pneg %p138
      // Predicated region
      $region9: #{tpu_custom_call.1} parent=5 // pred_check
        _
      $region10: #{tpu_custom_call.1} parent=5 // pred_check_branch
        %141 = sbr.rel (%p138) target = $region12
      $region11: #{tpu_custom_call.1} parent=5 // pred_region
        %s142 = ssub.s32 %s13, 1
        // Predicated region
        $region13: #{tpu_custom_call.1} parent=11 // pred_check
          %p143 = pneg %p60
        $region14: #{tpu_custom_call.1} parent=11 // pred_check_branch
          %145 = sbr.rel (%p143) target = $region16
        $region15: #{tpu_custom_call.1} parent=11 // pred_region
          _
        $region16: #{tpu_custom_call.1} parent=11 // pred_fallthru
          _
        // Predicated region
        $region17: #{tpu_custom_call.1} parent=11 // pred_check
          %p146 = pneg %p81
        $region18: #{tpu_custom_call.1} parent=11 // pred_check_branch
          %148 = sbr.rel (%p146) target = $region20
        $region19: #{tpu_custom_call.1} parent=11 // pred_region
          _
        $region20: #{tpu_custom_call.1} parent=11 // pred_fallthru
          _
        // Predicated region
        $region21: #{tpu_custom_call.1} parent=11 // pred_check
          %p149 = pneg %p102
        $region22: #{tpu_custom_call.1} parent=11 // pred_check_branch
          %151 = sbr.rel (%p149) target = $region24
        $region23: #{tpu_custom_call.1} parent=11 // pred_region
          _
        $region24: #{tpu_custom_call.1} parent=11 // pred_fallthru
          _
      $region12: #{tpu_custom_call.1} parent=5 // pred_fallthru
        _
      %p152 = scmp.lt.s32.totalorder %s13, 2
      // Predicated region
      $region25: #{tpu_custom_call.1} parent=5 // pred_check
        %p153 = pneg %p152
      $region26: #{tpu_custom_call.1} parent=5 // pred_check_branch
        %155 = sbr.rel (%p153) target = $region28
      $region27: #{tpu_custom_call.1} parent=5 // pred_region
        // Predicated region
        $region29: #{tpu_custom_call.1} parent=27 // pred_check
          %p156 = pneg %p33
        $region30: #{tpu_custom_call.1} parent=27 // pred_check_branch
          %158 = sbr.rel (%p156) target = $region32
        $region31: #{tpu_custom_call.1} parent=27 // pred_region
          %s159 = smul.u32 16, %s13
          %p160 = scmp.lt.s32.totalorder %s159, 31
          %s161 = scalar_select %p160, %s159, 31
          %s162 = smul.addr %s161, 4
          %s163 = scalar_lea.vmem %s0, %s162
          %s164 = smul.u32 16, %s13
        $region32: #{tpu_custom_call.1} parent=27 // pred_fallthru
          _
      $region28: #{tpu_custom_call.1} parent=5 // pred_fallthru
        _
      %p165 = scmp.le.s32.totalorder 1, %s13
      %p166 = scmp.lt.s32.totalorder %s13, 3
      %p167 = pnand %p165, %p166
      %p168 = pneg %p167
      // Predicated region
      $region33: #{tpu_custom_call.1} parent=5 // pred_check
        _
      $region34: #{tpu_custom_call.1} parent=5 // pred_check_branch
        %170 = sbr.rel (%p167) target = $region36
      $region35: #{tpu_custom_call.1} parent=5 // pred_region
        %s171 = ssub.s32 %s13, 1
        %s172 = smul.u32 16, %s18
        %p173 = scmp.lt.s32.totalorder %s172, 31
        %s174 = scalar_select %p173, %s172, 31
        %s175 = smul.addr %s174, 4
        %s176 = scalar_lea.vmem %s0, %s175
        %p177 = pneg %p39
        %p178 = pneg %p36
        %p179 = pneg %p60
        %p180 = pneg %p57
        %p181 = pneg %p81
        %p182 = pneg %p78
        %p183 = pneg %p102
        %p184 = pneg %p99
        %p185 = pneg %p128
        %p186 = pneg %p125
        %s187 = sand.u32 %s115, 1
        %s188 = scalar_lea.sflag [#allocation3], %s187
        %s189 = sand.u32 %s115, 1
        %s190 = smul.addr %s189, 8
        %s191 = scalar_lea.vmem [#allocation2], %s190
        %s192 = smul.u32 16, %s18
        %p193 = scmp.lt.s32.totalorder %s192, 31
        %s194 = scalar_select %p193, %s192, 31
        %s195 = smul.addr %s194, 4
        %s196 = scalar_lea.vmem %s0, %s195
        %s197 = smul.u32 16, %s18
        %v199 = vlaneseq
        %v200 = vshrl.u32 %v199, 7
        %v201 = vadd.s32 %v200, 8
        %v202 = vadd.s32 %v200, 16
        %v203 = vadd.s32 %v200, 24
        %v204 = vadd.s32 %v200, 32
        %v205 = vadd.s32 %v200, 40
        %v206 = vadd.s32 %v200, 48
        %v207 = vadd.s32 %v200, 56
        %v208 = vadd.s32 %v200, 64
        %v209 = vadd.s32 %v200, 72
        %v210 = vadd.s32 %v200, 80
        %v211 = vadd.s32 %v200, 88
        %v212 = vadd.s32 %v200, 96
        %v213 = vadd.s32 %v200, 104
        %v214 = vadd.s32 %v200, 112
        %v215 = vadd.s32 %v200, 120
        %vm216 = vcmp.lt.s32.totalorder %v200, 0
        %v217 = vsub.s32 0, %v200
        %v218 = vsel %vm216, %v217, %v200
        %v219 = vshrl.u32 %v218, 4
        %v220 = vand.u32 %v218, 15
        %v221 = vsub.s32 0, %v220
        %v222 = vsel %vm216, %v221, %v220
        %vm223 = vcmp.lt.s32.totalorder %v201, 0
        %v224 = vsub.s32 0, %v201
        %v225 = vsel %vm223, %v224, %v201
        %v226 = vshrl.u32 %v225, 4
        %v227 = vand.u32 %v225, 15
        %v228 = vsub.s32 0, %v227
        %v229 = vsel %vm223, %v228, %v227
        %vm230 = vcmp.lt.s32.totalorder %v202, 0
        %v231 = vsub.s32 0, %v202
        %v232 = vsel %vm230, %v231, %v202
        %v233 = vshrl.u32 %v232, 4
        %v234 = vand.u32 %v232, 15
        %v235 = vsub.s32 0, %v234
        %v236 = vsel %vm230, %v235, %v234
        %vm237 = vcmp.lt.s32.totalorder %v203, 0
        %v238 = vsub.s32 0, %v203
        %v239 = vsel %vm237, %v238, %v203
        %v240 = vshrl.u32 %v239, 4
        %v241 = vand.u32 %v239, 15
        %v242 = vsub.s32 0, %v241
        %v243 = vsel %vm237, %v242, %v241
        %vm244 = vcmp.lt.s32.totalorder %v204, 0
        %v245 = vsub.s32 0, %v204
        %v246 = vsel %vm244, %v245, %v204
        %v247 = vshrl.u32 %v246, 4
        %v248 = vand.u32 %v246, 15
        %v249 = vsub.s32 0, %v248
        %v250 = vsel %vm244, %v249, %v248
        %vm251 = vcmp.lt.s32.totalorder %v205, 0
        %v252 = vsub.s32 0, %v205
        %v253 = vsel %vm251, %v252, %v205
        %v254 = vshrl.u32 %v253, 4
        %v255 = vand.u32 %v253, 15
        %v256 = vsub.s32 0, %v255
        %v257 = vsel %vm251, %v256, %v255
        %vm258 = vcmp.lt.s32.totalorder %v206, 0
        %v259 = vsub.s32 0, %v206
        %v260 = vsel %vm258, %v259, %v206
        %v261 = vshrl.u32 %v260, 4
        %v262 = vand.u32 %v260, 15
        %v263 = vsub.s32 0, %v262
        %v264 = vsel %vm258, %v263, %v262
        %vm265 = vcmp.lt.s32.totalorder %v207, 0
        %v266 = vsub.s32 0, %v207
        %v267 = vsel %vm265, %v266, %v207
        %v268 = vshrl.u32 %v267, 4
        %v269 = vand.u32 %v267, 15
        %v270 = vsub.s32 0, %v269
        %v271 = vsel %vm265, %v270, %v269
        %vm272 = vcmp.lt.s32.totalorder %v208, 0
        %v273 = vsub.s32 0, %v208
        %v274 = vsel %vm272, %v273, %v208
        %v275 = vshrl.u32 %v274, 4
        %v276 = vand.u32 %v274, 15
        %v277 = vsub.s32 0, %v276
        %v278 = vsel %vm272, %v277, %v276
        %vm279 = vcmp.lt.s32.totalorder %v209, 0
        %v280 = vsub.s32 0, %v209
        %v281 = vsel %vm279, %v280, %v209
        %v282 = vshrl.u32 %v281, 4
        %v283 = vand.u32 %v281, 15
        %v284 = vsub.s32 0, %v283
        %v285 = vsel %vm279, %v284, %v283
        %vm286 = vcmp.lt.s32.totalorder %v210, 0
        %v287 = vsub.s32 0, %v210
        %v288 = vsel %vm286, %v287, %v210
        %v289 = vshrl.u32 %v288, 4
        %v290 = vand.u32 %v288, 15
        %v291 = vsub.s32 0, %v290
        %v292 = vsel %vm286, %v291, %v290
        %vm293 = vcmp.lt.s32.totalorder %v211, 0
        %v294 = vsub.s32 0, %v211
        %v295 = vsel %vm293, %v294, %v211
        %v296 = vshrl.u32 %v295, 4
        %v297 = vand.u32 %v295, 15
        %v298 = vsub.s32 0, %v297
        %v299 = vsel %vm293, %v298, %v297
        %vm300 = vcmp.lt.s32.totalorder %v212, 0
        %v301 = vsub.s32 0, %v212
        %v302 = vsel %vm300, %v301, %v212
        %v303 = vshrl.u32 %v302, 4
        %v304 = vand.u32 %v302, 15
        %v305 = vsub.s32 0, %v304
        %v306 = vsel %vm300, %v305, %v304
        %vm307 = vcmp.lt.s32.totalorder %v213, 0
        %v308 = vsub.s32 0, %v213
        %v309 = vsel %vm307, %v308, %v213
        %v310 = vshrl.u32 %v309, 4
        %v311 = vand.u32 %v309, 15
        %v312 = vsub.s32 0, %v311
        %v313 = vsel %vm307, %v312, %v311
        %vm314 = vcmp.lt.s32.totalorder %v214, 0
        %v315 = vsub.s32 0, %v214
        %v316 = vsel %vm314, %v315, %v214
        %v317 = vshrl.u32 %v316, 4
        %v318 = vand.u32 %v316, 15
        %v319 = vsub.s32 0, %v318
        %v320 = vsel %vm314, %v319, %v318
        %vm321 = vcmp.lt.s32.totalorder %v215, 0
        %v322 = vsub.s32 0, %v215
        %v323 = vsel %vm321, %v322, %v215
        %v324 = vshrl.u32 %v323, 4
        %v325 = vand.u32 %v323, 15
        %v326 = vsub.s32 0, %v325
        %v327 = vsel %vm321, %v326, %v325
        %vm328 = vcmp.ne.s32.totalorder %v222, 0
        %vm329 = vcmp.ne.s32.totalorder %v229, 0
        %vm330 = vcmp.ne.s32.totalorder %v236, 0
        %vm331 = vcmp.ne.s32.totalorder %v243, 0
        %vm332 = vcmp.ne.s32.totalorder %v250, 0
        %vm333 = vcmp.ne.s32.totalorder %v257, 0
        %vm334 = vcmp.ne.s32.totalorder %v264, 0
        %vm335 = vcmp.ne.s32.totalorder %v271, 0
        %vm336 = vcmp.ne.s32.totalorder %v278, 0
        %vm337 = vcmp.ne.s32.totalorder %v285, 0
        %vm338 = vcmp.ne.s32.totalorder %v292, 0
        %vm339 = vcmp.ne.s32.totalorder %v299, 0
        %vm340 = vcmp.ne.s32.totalorder %v306, 0
        %vm341 = vcmp.ne.s32.totalorder %v313, 0
        %vm342 = vcmp.ne.s32.totalorder %v320, 0
        %vm343 = vcmp.ne.s32.totalorder %v327, 0
        %vm344 = vcmp.lt.s32.totalorder %v222, 0
        %vm345 = vcmp.lt.s32.totalorder %v229, 0
        %vm346 = vcmp.lt.s32.totalorder %v236, 0
        %vm347 = vcmp.lt.s32.totalorder %v243, 0
        %vm348 = vcmp.lt.s32.totalorder %v250, 0
        %vm349 = vcmp.lt.s32.totalorder %v257, 0
        %vm350 = vcmp.lt.s32.totalorder %v264, 0
        %vm351 = vcmp.lt.s32.totalorder %v271, 0
        %vm352 = vcmp.lt.s32.totalorder %v278, 0
        %vm353 = vcmp.lt.s32.totalorder %v285, 0
        %vm354 = vcmp.lt.s32.totalorder %v292, 0
        %vm355 = vcmp.lt.s32.totalorder %v299, 0
        %vm356 = vcmp.lt.s32.totalorder %v306, 0
        %vm357 = vcmp.lt.s32.totalorder %v313, 0
        %vm358 = vcmp.lt.s32.totalorder %v320, 0
        %vm359 = vcmp.lt.s32.totalorder %v327, 0
        %vm360 = vmand %vm344, %vm328
        %vm361 = vmand %vm345, %vm329
        %vm362 = vmand %vm346, %vm330
        %vm363 = vmand %vm347, %vm331
        %vm364 = vmand %vm348, %vm332
        %vm365 = vmand %vm349, %vm333
        %vm366 = vmand %vm350, %vm334
        %vm367 = vmand %vm351, %vm335
        %vm368 = vmand %vm352, %vm336
        %vm369 = vmand %vm353, %vm337
        %vm370 = vmand %vm354, %vm338
        %vm371 = vmand %vm355, %vm339
        %vm372 = vmand %vm356, %vm340
        %vm373 = vmand %vm357, %vm341
        %vm374 = vmand %vm358, %vm342
        %vm375 = vmand %vm359, %vm343
        %v376 = vadd.s32 %v222, 16
        %v377 = vadd.s32 %v229, 16
        %v378 = vadd.s32 %v236, 16
        %v379 = vadd.s32 %v243, 16
        %v380 = vadd.s32 %v250, 16
        %v381 = vadd.s32 %v257, 16
        %v382 = vadd.s32 %v264, 16
        %v383 = vadd.s32 %v271, 16
        %v384 = vadd.s32 %v278, 16
        %v385 = vadd.s32 %v285, 16
        %v386 = vadd.s32 %v292, 16
        %v387 = vadd.s32 %v299, 16
        %v388 = vadd.s32 %v306, 16
        %v389 = vadd.s32 %v313, 16
        %v390 = vadd.s32 %v320, 16
        %v391 = vadd.s32 %v327, 16
        %v392 = vsel %vm360, %v376, %v222
        %v393 = vsel %vm361, %v377, %v229
        %v394 = vsel %vm362, %v378, %v236
        %v395 = vsel %vm363, %v379, %v243
        %v396 = vsel %vm364, %v380, %v250
        %v397 = vsel %vm365, %v381, %v257
        %v398 = vsel %vm366, %v382, %v264
        %v399 = vsel %vm367, %v383, %v271
        %v400 = vsel %vm368, %v384, %v278
        %v401 = vsel %vm369, %v385, %v285
        %v402 = vsel %vm370, %v386, %v292
        %v403 = vsel %vm371, %v387, %v299
        %v404 = vsel %vm372, %v388, %v306
        %v405 = vsel %vm373, %v389, %v313
        %v406 = vsel %vm374, %v390, %v320
        %v407 = vsel %vm375, %v391, %v327
        %vm408 = vcmp.ge.s32.totalorder %v392, 1
        %vm409 = vcmp.ge.s32.totalorder %v393, 1
        %vm410 = vcmp.ge.s32.totalorder %v394, 1
        %vm411 = vcmp.ge.s32.totalorder %v395, 1
        %vm412 = vcmp.ge.s32.totalorder %v396, 1
        %vm413 = vcmp.ge.s32.totalorder %v397, 1
        %vm414 = vcmp.ge.s32.totalorder %v398, 1
        %vm415 = vcmp.ge.s32.totalorder %v399, 1
        %vm416 = vcmp.ge.s32.totalorder %v400, 1
        %vm417 = vcmp.ge.s32.totalorder %v401, 1
        %vm418 = vcmp.ge.s32.totalorder %v402, 1
        %vm419 = vcmp.ge.s32.totalorder %v403, 1
        %vm420 = vcmp.ge.s32.totalorder %v404, 1
        %vm421 = vcmp.ge.s32.totalorder %v405, 1
        %vm422 = vcmp.ge.s32.totalorder %v406, 1
        %vm423 = vcmp.ge.s32.totalorder %v407, 1
        %v424 = vsel %vm408, 1, 0
        %v425 = vsel %vm409, 1, 0
        %v426 = vsel %vm410, 1, 0
        %v427 = vsel %vm411, 1, 0
        %v428 = vsel %vm412, 1, 0
        %v429 = vsel %vm413, 1, 0
        %v430 = vsel %vm414, 1, 0
        %v431 = vsel %vm415, 1, 0
        %v432 = vsel %vm416, 1, 0
        %v433 = vsel %vm417, 1, 0
        %v434 = vsel %vm418, 1, 0
        %v435 = vsel %vm419, 1, 0
        %v436 = vsel %vm420, 1, 0
        %v437 = vsel %vm421, 1, 0
        %v438 = vsel %vm422, 1, 0
        %v439 = vsel %vm423, 1, 0
        %v440 = vcvt.s32.f32 %v424
        %v441 = vcvt.s32.f32 %v425
        %v442 = vcvt.s32.f32 %v426
        %v443 = vcvt.s32.f32 %v427
        %v444 = vcvt.s32.f32 %v428
        %v445 = vcvt.s32.f32 %v429
        %v446 = vcvt.s32.f32 %v430
        %v447 = vcvt.s32.f32 %v431
        %v448 = vcvt.s32.f32 %v432
        %v449 = vcvt.s32.f32 %v433
        %v450 = vcvt.s32.f32 %v434
        %v451 = vcvt.s32.f32 %v435
        %v452 = vcvt.s32.f32 %v436
        %v453 = vcvt.s32.f32 %v437
        %v454 = vcvt.s32.f32 %v438
        %v455 = vcvt.s32.f32 %v439
        %vm456 = vcmp.ge.s32.totalorder %v392, 2
        %vm457 = vcmp.ge.s32.totalorder %v393, 2
        %vm458 = vcmp.ge.s32.totalorder %v394, 2
        %vm459 = vcmp.ge.s32.totalorder %v395, 2
        %vm460 = vcmp.ge.s32.totalorder %v396, 2
        %vm461 = vcmp.ge.s32.totalorder %v397, 2
        %vm462 = vcmp.ge.s32.totalorder %v398, 2
        %vm463 = vcmp.ge.s32.totalorder %v399, 2
        %vm464 = vcmp.ge.s32.totalorder %v400, 2
        %vm465 = vcmp.ge.s32.totalorder %v401, 2
        %vm466 = vcmp.ge.s32.totalorder %v402, 2
        %vm467 = vcmp.ge.s32.totalorder %v403, 2
        %vm468 = vcmp.ge.s32.totalorder %v404, 2
        %vm469 = vcmp.ge.s32.totalorder %v405, 2
        %vm470 = vcmp.ge.s32.totalorder %v406, 2
        %vm471 = vcmp.ge.s32.totalorder %v407, 2
        %v472 = vsel %vm456, 1, 0
        %v473 = vsel %vm457, 1, 0
        %v474 = vsel %vm458, 1, 0
        %v475 = vsel %vm459, 1, 0
        %v476 = vsel %vm460, 1, 0
        %v477 = vsel %vm461, 1, 0
        %v478 = vsel %vm462, 1, 0
        %v479 = vsel %vm463, 1, 0
        %v480 = vsel %vm464, 1, 0
        %v481 = vsel %vm465, 1, 0
        %v482 = vsel %vm466, 1, 0
        %v483 = vsel %vm467, 1, 0
        %v484 = vsel %vm468, 1, 0
        %v485 = vsel %vm469, 1, 0
        %v486 = vsel %vm470, 1, 0
        %v487 = vsel %vm471, 1, 0
        %v488 = vcvt.s32.f32 %v472
        %v489 = vcvt.s32.f32 %v473
        %v490 = vcvt.s32.f32 %v474
        %v491 = vcvt.s32.f32 %v475
        %v492 = vcvt.s32.f32 %v476
        %v493 = vcvt.s32.f32 %v477
        %v494 = vcvt.s32.f32 %v478
        %v495 = vcvt.s32.f32 %v479
        %v496 = vcvt.s32.f32 %v480
        %v497 = vcvt.s32.f32 %v481
        %v498 = vcvt.s32.f32 %v482
        %v499 = vcvt.s32.f32 %v483
        %v500 = vcvt.s32.f32 %v484
        %v501 = vcvt.s32.f32 %v485
        %v502 = vcvt.s32.f32 %v486
        %v503 = vcvt.s32.f32 %v487
        %vm504 = vcmp.ge.s32.totalorder %v392, 4
        %vm505 = vcmp.ge.s32.totalorder %v393, 4
        %vm506 = vcmp.ge.s32.totalorder %v394, 4
        %vm507 = vcmp.ge.s32.totalorder %v395, 4
        %vm508 = vcmp.ge.s32.totalorder %v396, 4
        %vm509 = vcmp.ge.s32.totalorder %v397, 4
        %vm510 = vcmp.ge.s32.totalorder %v398, 4
        %vm511 = vcmp.ge.s32.totalorder %v399, 4
        %vm512 = vcmp.ge.s32.totalorder %v400, 4
        %vm513 = vcmp.ge.s32.totalorder %v401, 4
        %vm514 = vcmp.ge.s32.totalorder %v402, 4
        %vm515 = vcmp.ge.s32.totalorder %v403, 4
        %vm516 = vcmp.ge.s32.totalorder %v404, 4
        %vm517 = vcmp.ge.s32.totalorder %v405, 4
        %vm518 = vcmp.ge.s32.totalorder %v406, 4
        %vm519 = vcmp.ge.s32.totalorder %v407, 4
        %v520 = vsel %vm504, 1, 0
        %v521 = vsel %vm505, 1, 0
        %v522 = vsel %vm506, 1, 0
        %v523 = vsel %vm507, 1, 0
        %v524 = vsel %vm508, 1, 0
        %v525 = vsel %vm509, 1, 0
        %v526 = vsel %vm510, 1, 0
        %v527 = vsel %vm511, 1, 0
        %v528 = vsel %vm512, 1, 0
        %v529 = vsel %vm513, 1, 0
        %v530 = vsel %vm514, 1, 0
        %v531 = vsel %vm515, 1, 0
        %v532 = vsel %vm516, 1, 0
        %v533 = vsel %vm517, 1, 0
        %v534 = vsel %vm518, 1, 0
        %v535 = vsel %vm519, 1, 0
        %v536 = vcvt.s32.f32 %v520
        %v537 = vcvt.s32.f32 %v521
        %v538 = vcvt.s32.f32 %v522
        %v539 = vcvt.s32.f32 %v523
        %v540 = vcvt.s32.f32 %v524
        %v541 = vcvt.s32.f32 %v525
        %v542 = vcvt.s32.f32 %v526
        %v543 = vcvt.s32.f32 %v527
        %v544 = vcvt.s32.f32 %v528
        %v545 = vcvt.s32.f32 %v529
        %v546 = vcvt.s32.f32 %v530
        %v547 = vcvt.s32.f32 %v531
        %v548 = vcvt.s32.f32 %v532
        %v549 = vcvt.s32.f32 %v533
        %v550 = vcvt.s32.f32 %v534
        %v551 = vcvt.s32.f32 %v535
        %vm552 = vcmp.ge.s32.totalorder %v392, 8
        %vm553 = vcmp.ge.s32.totalorder %v393, 8
        %vm554 = vcmp.ge.s32.totalorder %v394, 8
        %vm555 = vcmp.ge.s32.totalorder %v395, 8
        %vm556 = vcmp.ge.s32.totalorder %v396, 8
        %vm557 = vcmp.ge.s32.totalorder %v397, 8
        %vm558 = vcmp.ge.s32.totalorder %v398, 8
        %vm559 = vcmp.ge.s32.totalorder %v399, 8
        %vm560 = vcmp.ge.s32.totalorder %v400, 8
        %vm561 = vcmp.ge.s32.totalorder %v401, 8
        %vm562 = vcmp.ge.s32.totalorder %v402, 8
        %vm563 = vcmp.ge.s32.totalorder %v403, 8
        %vm564 = vcmp.ge.s32.totalorder %v404, 8
        %vm565 = vcmp.ge.s32.totalorder %v405, 8
        %vm566 = vcmp.ge.s32.totalorder %v406, 8
        %vm567 = vcmp.ge.s32.totalorder %v407, 8
        %v568 = vsel %vm552, 1, 0
        %v569 = vsel %vm553, 1, 0
        %v570 = vsel %vm554, 1, 0
        %v571 = vsel %vm555, 1, 0
        %v572 = vsel %vm556, 1, 0
        %v573 = vsel %vm557, 1, 0
        %v574 = vsel %vm558, 1, 0
        %v575 = vsel %vm559, 1, 0
        %v576 = vsel %vm560, 1, 0
        %v577 = vsel %vm561, 1, 0
        %v578 = vsel %vm562, 1, 0
        %v579 = vsel %vm563, 1, 0
        %v580 = vsel %vm564, 1, 0
        %v581 = vsel %vm565, 1, 0
        %v582 = vsel %vm566, 1, 0
        %v583 = vsel %vm567, 1, 0
        %v584 = vcvt.s32.f32 %v568
        %v585 = vcvt.s32.f32 %v569
        %v586 = vcvt.s32.f32 %v570
        %v587 = vcvt.s32.f32 %v571
        %v588 = vcvt.s32.f32 %v572
        %v589 = vcvt.s32.f32 %v573
        %v590 = vcvt.s32.f32 %v574
        %v591 = vcvt.s32.f32 %v575
        %v592 = vcvt.s32.f32 %v576
        %v593 = vcvt.s32.f32 %v577
        %v594 = vcvt.s32.f32 %v578
        %v595 = vcvt.s32.f32 %v579
        %v596 = vcvt.s32.f32 %v580
        %v597 = vcvt.s32.f32 %v581
        %v598 = vcvt.s32.f32 %v582
        %v599 = vcvt.s32.f32 %v583
        %v600 = vld [vmem:[%s196] sm:$0xf]
        %v601 = vld [vmem:[%s196 + $0x4] sm:$0xf]
        %v602 = vld [vmem:[%s196 + $0x8] sm:$0xf]
        %v603 = vld [vmem:[%s196 + $0xc] sm:$0xf]
        %v604 = vld [vmem:[%s196 + $0x10] sm:$0xf]
        %v605 = vld [vmem:[%s196 + $0x14] sm:$0xf]
        %v606 = vld [vmem:[%s196 + $0x18] sm:$0xf]
        %v607 = vld [vmem:[%s196 + $0x1c] sm:$0xf]
        %v608 = vld [vmem:[%s196 + $0x20] sm:$0xf]
        %v609 = vld [vmem:[%s196 + $0x24] sm:$0xf]
        %v610 = vld [vmem:[%s196 + $0x28] sm:$0xf]
        %v611 = vld [vmem:[%s196 + $0x2c] sm:$0xf]
        %v612 = vld [vmem:[%s196 + $0x30] sm:$0xf]
        %v613 = vld [vmem:[%s196 + $0x34] sm:$0xf]
        %v614 = vld [vmem:[%s196 + $0x38] sm:$0xf]
        %v615 = vld [vmem:[%s196 + $0x3c] sm:$0xf]
        %v616 = vunpack.c.l.bf16 %v600
        %v617 = vunpack.c.l.bf16 %v601
        %v618 = vunpack.c.l.bf16 %v602
        %v619 = vunpack.c.l.bf16 %v603
        %v620 = vunpack.c.l.bf16 %v604
        %v621 = vunpack.c.l.bf16 %v605
        %v622 = vunpack.c.l.bf16 %v606
        %v623 = vunpack.c.l.bf16 %v607
        %v624 = vunpack.c.l.bf16 %v608
        %v625 = vunpack.c.l.bf16 %v609
        %v626 = vunpack.c.l.bf16 %v610
        %v627 = vunpack.c.l.bf16 %v611
        %v628 = vunpack.c.l.bf16 %v612
        %v629 = vunpack.c.l.bf16 %v613
        %v630 = vunpack.c.l.bf16 %v614
        %v631 = vunpack.c.l.bf16 %v615
        %v632 = vrot.slane %v616, 6
        %v633 = vrot.slane %v617, 6
        %v634 = vrot.slane %v618, 6
        %v635 = vrot.slane %v619, 6
        %v636 = vrot.slane %v620, 6
        %v637 = vrot.slane %v621, 6
        %v638 = vrot.slane %v622, 6
        %v639 = vrot.slane %v623, 6
        %v640 = vrot.slane %v624, 6
        %v641 = vrot.slane %v625, 6
        %v642 = vrot.slane %v626, 6
        %v643 = vrot.slane %v627, 6
        %v644 = vrot.slane %v628, 6
        %v645 = vrot.slane %v629, 6
        %v646 = vrot.slane %v630, 6
        %v647 = vrot.slane %v631, 6
        %vm648 = vcmp.lt.s32.totalorder %v200, 2
        %v649 = vsel %vm648, %v646, %v647
        %v650 = vsel %vm648, %v645, %v646
        %v651 = vsel %vm648, %v644, %v645
        %v652 = vsel %vm648, %v643, %v644
        %v653 = vsel %vm648, %v642, %v643
        %v654 = vsel %vm648, %v641, %v642
        %v655 = vsel %vm648, %v640, %v641
        %v656 = vsel %vm648, %v639, %v640
        %v657 = vsel %vm648, %v638, %v639
        %v658 = vsel %vm648, %v637, %v638
        %v659 = vsel %vm648, %v636, %v637
        %v660 = vsel %vm648, %v635, %v636
        %v661 = vsel %vm648, %v634, %v635
        %v662 = vsel %vm648, %v633, %v634
        %v663 = vsel %vm648, %v632, %v633
        %v664 = vsel %vm648, %v647, %v632
        %v665 = vmul.f32 %v664, %v488
        %v666 = vmul.f32 %v663, %v489
        %v667 = vmul.f32 %v662, %v490
        %v668 = vmul.f32 %v661, %v491
        %v669 = vmul.f32 %v660, %v492
        %v670 = vmul.f32 %v659, %v493
        %v671 = vmul.f32 %v658, %v494
        %v672 = vmul.f32 %v657, %v495
        %v673 = vmul.f32 %v656, %v496
        %v674 = vmul.f32 %v655, %v497
        %v675 = vmul.f32 %v654, %v498
        %v676 = vmul.f32 %v653, %v499
        %v677 = vmul.f32 %v652, %v500
        %v678 = vmul.f32 %v651, %v501
        %v679 = vmul.f32 %v650, %v502
        %v680 = vmul.f32 %v649, %v503
        %v681 = vrot.slane %v616, 7
        %v682 = vrot.slane %v617, 7
        %v683 = vrot.slane %v618, 7
        %v684 = vrot.slane %v619, 7
        %v685 = vrot.slane %v620, 7
        %v686 = vrot.slane %v621, 7
        %v687 = vrot.slane %v622, 7
        %v688 = vrot.slane %v623, 7
        %v689 = vrot.slane %v624, 7
        %v690 = vrot.slane %v625, 7
        %v691 = vrot.slane %v626, 7
        %v692 = vrot.slane %v627, 7
        %v693 = vrot.slane %v628, 7
        %v694 = vrot.slane %v629, 7
        %v695 = vrot.slane %v630, 7
        %v696 = vrot.slane %v631, 7
        %vm697 = vcmp.lt.s32.totalorder %v200, 1
        %v698 = vsel %vm697, %v695, %v696
        %v699 = vsel %vm697, %v694, %v695
        %v700 = vsel %vm697, %v693, %v694
        %v701 = vsel %vm697, %v692, %v693
        %v702 = vsel %vm697, %v691, %v692
        %v703 = vsel %vm697, %v690, %v691
        %v704 = vsel %vm697, %v689, %v690
        %v705 = vsel %vm697, %v688, %v689
        %v706 = vsel %vm697, %v687, %v688
        %v707 = vsel %vm697, %v686, %v687
        %v708 = vsel %vm697, %v685, %v686
        %v709 = vsel %vm697, %v684, %v685
        %v710 = vsel %vm697, %v683, %v684
        %v711 = vsel %vm697, %v682, %v683
        %v712 = vsel %vm697, %v681, %v682
        %v713 = vsel %vm697, %v696, %v681
        %v714 = vmul.f32 %v713, %v440
        %v715 = vmul.f32 %v712, %v441
        %v716 = vmul.f32 %v711, %v442
        %v717 = vmul.f32 %v710, %v443
        %v718 = vmul.f32 %v709, %v444
        %v719 = vmul.f32 %v708, %v445
        %v720 = vmul.f32 %v707, %v446
        %v721 = vmul.f32 %v706, %v447
        %v722 = vmul.f32 %v705, %v448
        %v723 = vmul.f32 %v704, %v449
        %v724 = vmul.f32 %v703, %v450
        %v725 = vmul.f32 %v702, %v451
        %v726 = vmul.f32 %v701, %v452
        %v727 = vmul.f32 %v700, %v453
        %v728 = vmul.f32 %v699, %v454
        %v729 = vmul.f32 %v698, %v455
        %746 = vrot.lane.b32.xlu0 %v714, 8
        %v747 = vpop.permute.xlu0 %746
        %748 = vrot.lane.b32.xlu0 %v715, 8
        %v749 = vpop.permute.xlu0 %748
        %750 = vrot.lane.b32.xlu0 %v716, 8
        %v751 = vpop.permute.xlu0 %750
        %752 = vrot.lane.b32.xlu0 %v717, 8
        %v753 = vpop.permute.xlu0 %752
        %754 = vrot.lane.b32.xlu0 %v718, 8
        %v755 = vpop.permute.xlu0 %754
        %756 = vrot.lane.b32.xlu0 %v719, 8
        %v757 = vpop.permute.xlu0 %756
        %758 = vrot.lane.b32.xlu0 %v720, 8
        %v759 = vpop.permute.xlu0 %758
        %760 = vrot.lane.b32.xlu0 %v721, 8
        %v761 = vpop.permute.xlu0 %760
        %762 = vrot.lane.b32.xlu0 %v722, 8
        %v763 = vpop.permute.xlu0 %762
        %764 = vrot.lane.b32.xlu0 %v723, 8
        %v765 = vpop.permute.xlu0 %764
        %766 = vrot.lane.b32.xlu0 %v724, 8
        %v767 = vpop.permute.xlu0 %766
        %768 = vrot.lane.b32.xlu0 %v725, 8
        %v769 = vpop.permute.xlu0 %768
        %770 = vrot.lane.b32.xlu0 %v726, 8
        %v771 = vpop.permute.xlu0 %770
        %772 = vrot.lane.b32.xlu0 %v727, 8
        %v773 = vpop.permute.xlu0 %772
        %774 = vrot.lane.b32.xlu0 %v728, 8
        %v775 = vpop.permute.xlu0 %774
        %776 = vrot.lane.b32.xlu0 %v729, 8
        %v777 = vpop.permute.xlu0 %776
        %810 = vrot.lane.b32.xlu0 %v616, 16
        %v811 = vpop.permute.xlu0 %810
        %812 = vrot.lane.b32.xlu0 %v617, 16
        %v813 = vpop.permute.xlu0 %812
        %814 = vrot.lane.b32.xlu0 %v618, 16
        %v815 = vpop.permute.xlu0 %814
        %816 = vrot.lane.b32.xlu0 %v619, 16
        %v817 = vpop.permute.xlu0 %816
        %818 = vrot.lane.b32.xlu0 %v620, 16
        %v819 = vpop.permute.xlu0 %818
        %820 = vrot.lane.b32.xlu0 %v621, 16
        %v821 = vpop.permute.xlu0 %820
        %822 = vrot.lane.b32.xlu0 %v622, 16
        %v823 = vpop.permute.xlu0 %822
        %824 = vrot.lane.b32.xlu0 %v623, 16
        %v825 = vpop.permute.xlu0 %824
        %826 = vrot.lane.b32.xlu0 %v624, 16
        %v827 = vpop.permute.xlu0 %826
        %828 = vrot.lane.b32.xlu0 %v625, 16
        %v829 = vpop.permute.xlu0 %828
        %830 = vrot.lane.b32.xlu0 %v626, 16
        %v831 = vpop.permute.xlu0 %830
        %832 = vrot.lane.b32.xlu0 %v627, 16
        %v833 = vpop.permute.xlu0 %832
        %834 = vrot.lane.b32.xlu0 %v628, 16
        %v835 = vpop.permute.xlu0 %834
        %836 = vrot.lane.b32.xlu0 %v629, 16
        %v837 = vpop.permute.xlu0 %836
        %838 = vrot.lane.b32.xlu0 %v630, 16
        %v839 = vpop.permute.xlu0 %838
        %840 = vrot.lane.b32.xlu0 %v631, 16
        %v841 = vpop.permute.xlu0 %840
        %vm858 = vcmask 64512
        %v859 = vsel %vm858, %v665, %v747
        %v860 = vsel %vm858, %v666, %v749
        %v861 = vsel %vm858, %v667, %v751
        %v862 = vsel %vm858, %v668, %v753
        %v863 = vsel %vm858, %v669, %v755
        %v864 = vsel %vm858, %v670, %v757
        %v865 = vsel %vm858, %v671, %v759
        %v866 = vsel %vm858, %v672, %v761
        %v867 = vsel %vm858, %v673, %v763
        %v868 = vsel %vm858, %v674, %v765
        %v869 = vsel %vm858, %v675, %v767
        %v870 = vsel %vm858, %v676, %v769
        %v871 = vsel %vm858, %v677, %v771
        %v872 = vsel %vm858, %v678, %v773
        %v873 = vsel %vm858, %v679, %v775
        %v874 = vsel %vm858, %v680, %v777
        %vm875 = vcmask 130048
        %v876 = vsel %vm875, %v859, %v811
        %v877 = vsel %vm875, %v860, %v813
        %v878 = vsel %vm875, %v861, %v815
        %v879 = vsel %vm875, %v862, %v817
        %v880 = vsel %vm875, %v863, %v819
        %v881 = vsel %vm875, %v864, %v821
        %v882 = vsel %vm875, %v865, %v823
        %v883 = vsel %vm875, %v866, %v825
        %v884 = vsel %vm875, %v867, %v827
        %v885 = vsel %vm875, %v868, %v829
        %v886 = vsel %vm875, %v869, %v831
        %v887 = vsel %vm875, %v870, %v833
        %v888 = vsel %vm875, %v871, %v835
        %v889 = vsel %vm875, %v872, %v837
        %v890 = vsel %vm875, %v873, %v839
        %v891 = vsel %vm875, %v874, %v841
        %v892 = vpack.c.bf16 %v877, %v876
        %v893 = vpack.c.bf16 %v879, %v878
        %v894 = vpack.c.bf16 %v881, %v880
        %v895 = vpack.c.bf16 %v883, %v882
        %v896 = vpack.c.bf16 %v885, %v884
        %v897 = vpack.c.bf16 %v887, %v886
        %v898 = vpack.c.bf16 %v889, %v888
        %v899 = vpack.c.bf16 %v891, %v890
        %v900 = vld [vmem:[%s1] sm:$0xf]
        %v901 = vld [vmem:[%s1 + $0x4] sm:$0xf]
        %v902 = vld [vmem:[%s1 + $0x8] sm:$0xf]
        %v903 = vld [vmem:[%s1 + $0xc] sm:$0x1]
        %v904 = vunpack.c.l.bf16 %v903
        %v905 = vperm.slane %v904, 0
        %v909 = vunpack.c.l.b16 %v900
        %v910 = vunpack.c.l.b16 %v901
        %v911 = vunpack.c.l.b16 %v902
        %v912 = vpack.c.b16 %v910, %v909
        %v913 = vpack.c.b16 %v911, %v911
        %vm915 = vcmask 195584
        %v917 = vsel %vm915, %v892, 0
        %v920 = vsel %vm915, %v893, 0
        %v923 = vsel %vm915, %v894, 0
        %v926 = vsel %vm915, %v895, 0
        %v929 = vsel %vm915, %v896, 0
        %v932 = vsel %vm915, %v897, 0
        %v935 = vsel %vm915, %v898, 0
        %v938 = vsel %vm915, %v899, 0
        %vm940 = vcmask 1043456
        %v942 = vsel %vm940, %v913, 0
        %944 = vmatpush.bf16.msra.mxu0 0
        %945 = vmatpush.bf16.msra.mxu0 0
        %946 = vmatpush.bf16.msra.mxu0 0
        %947 = vmatpush.bf16.msra.mxu0 0
        %948 = vmatpush.bf16.msra.mxu0 0
        %949 = vmatpush.bf16.msra.mxu0 0
        %950 = vmatpush.bf16.msra.mxu0 %v942
        %951 = vmatpush.bf16.msra.mxu0 %v912
        %952 = vmatmul.bf16.gmra.mxu0 %v917
        %v953 = vpop.f32.mrf.mxu0
        %v954 = vadd.f32 %v905, %v953
        %v955 = vpop.f32.mrf.mxu0
        %v956 = vadd.f32 %v905, %v955
        %957 = vmatmul.bf16.gmra.mxu0 %v920
        %v958 = vpop.f32.mrf.mxu0
        %v959 = vadd.f32 %v905, %v958
        %v960 = vpop.f32.mrf.mxu0
        %v961 = vadd.f32 %v905, %v960
        %962 = vmatmul.bf16.gmra.mxu0 %v923
        %v963 = vpop.f32.mrf.mxu0
        %v964 = vadd.f32 %v905, %v963
        %v965 = vpop.f32.mrf.mxu0
        %v966 = vadd.f32 %v905, %v965
        %967 = vmatmul.bf16.gmra.mxu0 %v926
        %v968 = vpop.f32.mrf.mxu0
        %v969 = vadd.f32 %v905, %v968
        %v970 = vpop.f32.mrf.mxu0
        %v971 = vadd.f32 %v905, %v970
        %972 = vmatmul.bf16.gmra.mxu0 %v929
        %v973 = vpop.f32.mrf.mxu0
        %v974 = vadd.f32 %v905, %v973
        %v975 = vpop.f32.mrf.mxu0
        %v976 = vadd.f32 %v905, %v975
        %977 = vmatmul.bf16.gmra.mxu0 %v932
        %v978 = vpop.f32.mrf.mxu0
        %v979 = vadd.f32 %v905, %v978
        %v980 = vpop.f32.mrf.mxu0
        %v981 = vadd.f32 %v905, %v980
        %982 = vmatmul.bf16.gmra.mxu0 %v935
        %v983 = vpop.f32.mrf.mxu0
        %v984 = vadd.f32 %v905, %v983
        %v985 = vpop.f32.mrf.mxu0
        %v986 = vadd.f32 %v905, %v985
        %987 = vmatmul.bf16.gmra.mxu0 %v938
        %v988 = vpop.f32.mrf.mxu0
        %v989 = vadd.f32 %v905, %v988
        %v990 = vpop.f32.mrf.mxu0
        %v991 = vadd.f32 %v905, %v990
        %992 = vdwg.mxu0
        %v993 = vmax.f32 %v954, 0.0
        %v994 = vmax.f32 %v956, 0.0
        %v995 = vmax.f32 %v959, 0.0
        %v996 = vmax.f32 %v961, 0.0
        %v997 = vmax.f32 %v964, 0.0
        %v998 = vmax.f32 %v966, 0.0
        %v999 = vmax.f32 %v969, 0.0
        %v1000 = vmax.f32 %v971, 0.0
        %v1001 = vmax.f32 %v974, 0.0
        %v1002 = vmax.f32 %v976, 0.0
        %v1003 = vmax.f32 %v979, 0.0
        %v1004 = vmax.f32 %v981, 0.0
        %v1005 = vmax.f32 %v984, 0.0
        %v1006 = vmax.f32 %v986, 0.0
        %v1007 = vmax.f32 %v989, 0.0
        %v1008 = vmax.f32 %v991, 0.0
        %v1009 = vrot.slane %v993, 6
        %v1010 = vrot.slane %v994, 6
        %v1011 = vrot.slane %v995, 6
        %v1012 = vrot.slane %v996, 6
        %v1013 = vrot.slane %v997, 6
        %v1014 = vrot.slane %v998, 6
        %v1015 = vrot.slane %v999, 6
        %v1016 = vrot.slane %v1000, 6
        %v1017 = vrot.slane %v1001, 6
        %v1018 = vrot.slane %v1002, 6
        %v1019 = vrot.slane %v1003, 6
        %v1020 = vrot.slane %v1004, 6
        %v1021 = vrot.slane %v1005, 6
        %v1022 = vrot.slane %v1006, 6
        %v1023 = vrot.slane %v1007, 6
        %v1024 = vrot.slane %v1008, 6
        %v1025 = vsel %vm648, %v1023, %v1024
        %v1026 = vsel %vm648, %v1022, %v1023
        %v1027 = vsel %vm648, %v1021, %v1022
        %v1028 = vsel %vm648, %v1020, %v1021
        %v1029 = vsel %vm648, %v1019, %v1020
        %v1030 = vsel %vm648, %v1018, %v1019
        %v1031 = vsel %vm648, %v1017, %v1018
        %v1032 = vsel %vm648, %v1016, %v1017
        %v1033 = vsel %vm648, %v1015, %v1016
        %v1034 = vsel %vm648, %v1014, %v1015
        %v1035 = vsel %vm648, %v1013, %v1014
        %v1036 = vsel %vm648, %v1012, %v1013
        %v1037 = vsel %vm648, %v1011, %v1012
        %v1038 = vsel %vm648, %v1010, %v1011
        %v1039 = vsel %vm648, %v1009, %v1010
        %v1040 = vsel %vm648, %v1024, %v1009
        %v1041 = vmul.f32 %v1040, %v488
        %v1042 = vmul.f32 %v1039, %v489
        %v1043 = vmul.f32 %v1038, %v490
        %v1044 = vmul.f32 %v1037, %v491
        %v1045 = vmul.f32 %v1036, %v492
        %v1046 = vmul.f32 %v1035, %v493
        %v1047 = vmul.f32 %v1034, %v494
        %v1048 = vmul.f32 %v1033, %v495
        %v1049 = vmul.f32 %v1032, %v496
        %v1050 = vmul.f32 %v1031, %v497
        %v1051 = vmul.f32 %v1030, %v498
        %v1052 = vmul.f32 %v1029, %v499
        %v1053 = vmul.f32 %v1028, %v500
        %v1054 = vmul.f32 %v1027, %v501
        %v1055 = vmul.f32 %v1026, %v502
        %v1056 = vmul.f32 %v1025, %v503
        %v1057 = vrot.slane %v993, 7
        %v1058 = vrot.slane %v994, 7
        %v1059 = vrot.slane %v995, 7
        %v1060 = vrot.slane %v996, 7
        %v1061 = vrot.slane %v997, 7
        %v1062 = vrot.slane %v998, 7
        %v1063 = vrot.slane %v999, 7
        %v1064 = vrot.slane %v1000, 7
        %v1065 = vrot.slane %v1001, 7
        %v1066 = vrot.slane %v1002, 7
        %v1067 = vrot.slane %v1003, 7
        %v1068 = vrot.slane %v1004, 7
        %v1069 = vrot.slane %v1005, 7
        %v1070 = vrot.slane %v1006, 7
        %v1071 = vrot.slane %v1007, 7
        %v1072 = vrot.slane %v1008, 7
        %v1073 = vsel %vm697, %v1071, %v1072
        %v1074 = vsel %vm697, %v1070, %v1071
        %v1075 = vsel %vm697, %v1069, %v1070
        %v1076 = vsel %vm697, %v1068, %v1069
        %v1077 = vsel %vm697, %v1067, %v1068
        %v1078 = vsel %vm697, %v1066, %v1067
        %v1079 = vsel %vm697, %v1065, %v1066
        %v1080 = vsel %vm697, %v1064, %v1065
        %v1081 = vsel %vm697, %v1063, %v1064
        %v1082 = vsel %vm697, %v1062, %v1063
        %v1083 = vsel %vm697, %v1061, %v1062
        %v1084 = vsel %vm697, %v1060, %v1061
        %v1085 = vsel %vm697, %v1059, %v1060
        %v1086 = vsel %vm697, %v1058, %v1059
        %v1087 = vsel %vm697, %v1057, %v1058
        %v1088 = vsel %vm697, %v1072, %v1057
        %v1089 = vmul.f32 %v1088, %v440
        %v1090 = vmul.f32 %v1087, %v441
        %v1091 = vmul.f32 %v1086, %v442
        %v1092 = vmul.f32 %v1085, %v443
        %v1093 = vmul.f32 %v1084, %v444
        %v1094 = vmul.f32 %v1083, %v445
        %v1095 = vmul.f32 %v1082, %v446
        %v1096 = vmul.f32 %v1081, %v447
        %v1097 = vmul.f32 %v1080, %v448
        %v1098 = vmul.f32 %v1079, %v449
        %v1099 = vmul.f32 %v1078, %v450
        %v1100 = vmul.f32 %v1077, %v451
        %v1101 = vmul.f32 %v1076, %v452
        %v1102 = vmul.f32 %v1075, %v453
        %v1103 = vmul.f32 %v1074, %v454
        %v1104 = vmul.f32 %v1073, %v455
        %1121 = vrot.lane.b32.xlu0 %v1089, 16
        %v1122 = vpop.permute.xlu0 %1121
        %1123 = vrot.lane.b32.xlu0 %v1090, 16
        %v1124 = vpop.permute.xlu0 %1123
        %1125 = vrot.lane.b32.xlu0 %v1091, 16
        %v1126 = vpop.permute.xlu0 %1125
        %1127 = vrot.lane.b32.xlu0 %v1092, 16
        %v1128 = vpop.permute.xlu0 %1127
        %1129 = vrot.lane.b32.xlu0 %v1093, 16
        %v1130 = vpop.permute.xlu0 %1129
        %1131 = vrot.lane.b32.xlu0 %v1094, 16
        %v1132 = vpop.permute.xlu0 %1131
        %1133 = vrot.lane.b32.xlu0 %v1095, 16
        %v1134 = vpop.permute.xlu0 %1133
        %1135 = vrot.lane.b32.xlu0 %v1096, 16
        %v1136 = vpop.permute.xlu0 %1135
        %1137 = vrot.lane.b32.xlu0 %v1097, 16
        %v1138 = vpop.permute.xlu0 %1137
        %1139 = vrot.lane.b32.xlu0 %v1098, 16
        %v1140 = vpop.permute.xlu0 %1139
        %1141 = vrot.lane.b32.xlu0 %v1099, 16
        %v1142 = vpop.permute.xlu0 %1141
        %1143 = vrot.lane.b32.xlu0 %v1100, 16
        %v1144 = vpop.permute.xlu0 %1143
        %1145 = vrot.lane.b32.xlu0 %v1101, 16
        %v1146 = vpop.permute.xlu0 %1145
        %1147 = vrot.lane.b32.xlu0 %v1102, 16
        %v1148 = vpop.permute.xlu0 %1147
        %1149 = vrot.lane.b32.xlu0 %v1103, 16
        %v1150 = vpop.permute.xlu0 %1149
        %1151 = vrot.lane.b32.xlu0 %v1104, 16
        %v1152 = vpop.permute.xlu0 %1151
        %1185 = vrot.lane.b32.xlu0 %v993, 32
        %v1186 = vpop.permute.xlu0 %1185
        %1187 = vrot.lane.b32.xlu0 %v994, 32
        %v1188 = vpop.permute.xlu0 %1187
        %1189 = vrot.lane.b32.xlu0 %v995, 32
        %v1190 = vpop.permute.xlu0 %1189
        %1191 = vrot.lane.b32.xlu0 %v996, 32
        %v1192 = vpop.permute.xlu0 %1191
        %1193 = vrot.lane.b32.xlu0 %v997, 32
        %v1194 = vpop.permute.xlu0 %1193
        %1195 = vrot.lane.b32.xlu0 %v998, 32
        %v1196 = vpop.permute.xlu0 %1195
        %1197 = vrot.lane.b32.xlu0 %v999, 32
        %v1198 = vpop.permute.xlu0 %1197
        %1199 = vrot.lane.b32.xlu0 %v1000, 32
        %v1200 = vpop.permute.xlu0 %1199
        %1201 = vrot.lane.b32.xlu0 %v1001, 32
        %v1202 = vpop.permute.xlu0 %1201
        %1203 = vrot.lane.b32.xlu0 %v1002, 32
        %v1204 = vpop.permute.xlu0 %1203
        %1205 = vrot.lane.b32.xlu0 %v1003, 32
        %v1206 = vpop.permute.xlu0 %1205
        %1207 = vrot.lane.b32.xlu0 %v1004, 32
        %v1208 = vpop.permute.xlu0 %1207
        %1209 = vrot.lane.b32.xlu0 %v1005, 32
        %v1210 = vpop.permute.xlu0 %1209
        %1211 = vrot.lane.b32.xlu0 %v1006, 32
        %v1212 = vpop.permute.xlu0 %1211
        %1213 = vrot.lane.b32.xlu0 %v1007, 32
        %v1214 = vpop.permute.xlu0 %1213
        %1215 = vrot.lane.b32.xlu0 %v1008, 32
        %v1216 = vpop.permute.xlu0 %1215
        %v1233 = vsel %vm875, %v1041, %v1122
        %v1234 = vsel %vm875, %v1042, %v1124
        %v1235 = vsel %vm875, %v1043, %v1126
        %v1236 = vsel %vm875, %v1044, %v1128
        %v1237 = vsel %vm875, %v1045, %v1130
        %v1238 = vsel %vm875, %v1046, %v1132
        %v1239 = vsel %vm875, %v1047, %v1134
        %v1240 = vsel %vm875, %v1048, %v1136
        %v1241 = vsel %vm875, %v1049, %v1138
        %v1242 = vsel %vm875, %v1050, %v1140
        %v1243 = vsel %vm875, %v1051, %v1142
        %v1244 = vsel %vm875, %v1052, %v1144
        %v1245 = vsel %vm875, %v1053, %v1146
        %v1246 = vsel %vm875, %v1054, %v1148
        %v1247 = vsel %vm875, %v1055, %v1150
        %v1248 = vsel %vm875, %v1056, %v1152
        %vm1249 = vcmask 261120
        %v1250 = vsel %vm1249, %v1233, %v1186
        %v1251 = vsel %vm1249, %v1234, %v1188
        %v1252 = vsel %vm1249, %v1235, %v1190
        %v1253 = vsel %vm1249, %v1236, %v1192
        %v1254 = vsel %vm1249, %v1237, %v1194
        %v1255 = vsel %vm1249, %v1238, %v1196
        %v1256 = vsel %vm1249, %v1239, %v1198
        %v1257 = vsel %vm1249, %v1240, %v1200
        %v1258 = vsel %vm1249, %v1241, %v1202
        %v1259 = vsel %vm1249, %v1242, %v1204
        %v1260 = vsel %vm1249, %v1243, %v1206
        %v1261 = vsel %vm1249, %v1244, %v1208
        %v1262 = vsel %vm1249, %v1245, %v1210
        %v1263 = vsel %vm1249, %v1246, %v1212
        %v1264 = vsel %vm1249, %v1247, %v1214
        %v1265 = vsel %vm1249, %v1248, %v1216
        %v1266 = vpack.c.bf16 %v1251, %v1250
        %v1267 = vpack.c.bf16 %v1253, %v1252
        %v1268 = vpack.c.bf16 %v1255, %v1254
        %v1269 = vpack.c.bf16 %v1257, %v1256
        %v1270 = vpack.c.bf16 %v1259, %v1258
        %v1271 = vpack.c.bf16 %v1261, %v1260
        %v1272 = vpack.c.bf16 %v1263, %v1262
        %v1273 = vpack.c.bf16 %v1265, %v1264
        %v1274 = vld [vmem:[%s1 + $0x10] sm:$0xf]
        %v1275 = vld [vmem:[%s1 + $0x14] sm:$0xf]
        %v1276 = vld [vmem:[%s1 + $0x18] sm:$0xf]
        %v1277 = vld [vmem:[%s1 + $0x1c] sm:$0xf]
        %v1278 = vld [vmem:[%s1 + $0x20] sm:$0xf]
        %v1279 = vld [vmem:[%s1 + $0x24] sm:$0xf]
        %v1280 = vld [vmem:[%s1 + $0x28] sm:$0x1]
        %v1281 = vunpack.c.l.bf16 %v1280
        %v1282 = vperm.slane %v1281, 0
        %v1289 = vunpack.c.l.b16 %v1274
        %v1290 = vunpack.c.l.b16 %v1275
        %v1291 = vunpack.c.l.b16 %v1276
        %v1292 = vunpack.c.l.b16 %v1277
        %v1293 = vunpack.c.l.b16 %v1278
        %v1294 = vunpack.c.l.b16 %v1279
        %v1295 = vpack.c.b16 %v1290, %v1289
        %v1296 = vpack.c.b16 %v1292, %v1291
        %v1297 = vpack.c.b16 %v1294, %v1293
        %vm1301 = vcmask 392192
        %v1303 = vsel %vm1301, %v1266, 0
        %v1306 = vsel %vm1301, %v1267, 0
        %v1309 = vsel %vm1301, %v1268, 0
        %v1312 = vsel %vm1301, %v1269, 0
        %v1315 = vsel %vm1301, %v1270, 0
        %v1318 = vsel %vm1301, %v1271, 0
        %v1321 = vsel %vm1301, %v1272, 0
        %v1324 = vsel %vm1301, %v1273, 0
        %1326 = vmatpush.bf16.msra.mxu0 0
        %1327 = vmatpush.bf16.msra.mxu0 0
        %1328 = vmatpush.bf16.msra.mxu0 0
        %1329 = vmatpush.bf16.msra.mxu0 0
        %1330 = vmatpush.bf16.msra.mxu0 0
        %1331 = vmatpush.bf16.msra.mxu0 %v1297
        %1332 = vmatpush.bf16.msra.mxu0 %v1296
        %1333 = vmatpush.bf16.msra.mxu0 %v1295
        %1334 = vmatmul.bf16.gmra.mxu0 %v1303
        %v1335 = vpop.f32.mrf.mxu0
        %v1336 = vadd.f32 %v1282, %v1335
        %v1337 = vpop.f32.mrf.mxu0
        %v1338 = vadd.f32 %v1282, %v1337
        %1339 = vmatmul.bf16.gmra.mxu0 %v1306
        %v1340 = vpop.f32.mrf.mxu0
        %v1341 = vadd.f32 %v1282, %v1340
        %v1342 = vpop.f32.mrf.mxu0
        %v1343 = vadd.f32 %v1282, %v1342
        %1344 = vmatmul.bf16.gmra.mxu0 %v1309
        %v1345 = vpop.f32.mrf.mxu0
        %v1346 = vadd.f32 %v1282, %v1345
        %v1347 = vpop.f32.mrf.mxu0
        %v1348 = vadd.f32 %v1282, %v1347
        %1349 = vmatmul.bf16.gmra.mxu0 %v1312
        %v1350 = vpop.f32.mrf.mxu0
        %v1351 = vadd.f32 %v1282, %v1350
        %v1352 = vpop.f32.mrf.mxu0
        %v1353 = vadd.f32 %v1282, %v1352
        %1354 = vmatmul.bf16.gmra.mxu0 %v1315
        %v1355 = vpop.f32.mrf.mxu0
        %v1356 = vadd.f32 %v1282, %v1355
        %v1357 = vpop.f32.mrf.mxu0
        %v1358 = vadd.f32 %v1282, %v1357
        %1359 = vmatmul.bf16.gmra.mxu0 %v1318
        %v1360 = vpop.f32.mrf.mxu0
        %v1361 = vadd.f32 %v1282, %v1360
        %v1362 = vpop.f32.mrf.mxu0
        %v1363 = vadd.f32 %v1282, %v1362
        %1364 = vmatmul.bf16.gmra.mxu0 %v1321
        %v1365 = vpop.f32.mrf.mxu0
        %v1366 = vadd.f32 %v1282, %v1365
        %v1367 = vpop.f32.mrf.mxu0
        %v1368 = vadd.f32 %v1282, %v1367
        %1369 = vmatmul.bf16.gmra.mxu0 %v1324
        %v1370 = vpop.f32.mrf.mxu0
        %v1371 = vadd.f32 %v1282, %v1370
        %v1372 = vpop.f32.mrf.mxu0
        %v1373 = vadd.f32 %v1282, %v1372
        %1374 = vdwg.mxu0
        %v1375 = vmax.f32 %v1336, 0.0
        %v1376 = vmax.f32 %v1338, 0.0
        %v1377 = vmax.f32 %v1341, 0.0
        %v1378 = vmax.f32 %v1343, 0.0
        %v1379 = vmax.f32 %v1346, 0.0
        %v1380 = vmax.f32 %v1348, 0.0
        %v1381 = vmax.f32 %v1351, 0.0
        %v1382 = vmax.f32 %v1353, 0.0
        %v1383 = vmax.f32 %v1356, 0.0
        %v1384 = vmax.f32 %v1358, 0.0
        %v1385 = vmax.f32 %v1361, 0.0
        %v1386 = vmax.f32 %v1363, 0.0
        %v1387 = vmax.f32 %v1366, 0.0
        %v1388 = vmax.f32 %v1368, 0.0
        %v1389 = vmax.f32 %v1371, 0.0
        %v1390 = vmax.f32 %v1373, 0.0
        %v1391 = vld [vmem:[%s1 + $0x2c] sm:$0xf]
        %v1392 = vld [vmem:[%s1 + $0x30] sm:$0x1]
        %v1393 = vunpack.c.l.bf16 %v1392
        %v1394 = vperm.slane %v1393, 0
        %v1411 = vunpack.c.l.b16 %v600
        %v1412 = vunpack.c.l.b16 %v601
        %v1413 = vunpack.c.l.b16 %v602
        %v1414 = vunpack.c.l.b16 %v603
        %v1415 = vunpack.c.l.b16 %v604
        %v1416 = vunpack.c.l.b16 %v605
        %v1417 = vunpack.c.l.b16 %v606
        %v1418 = vunpack.c.l.b16 %v607
        %v1419 = vunpack.c.l.b16 %v608
        %v1420 = vunpack.c.l.b16 %v609
        %v1421 = vunpack.c.l.b16 %v610
        %v1422 = vunpack.c.l.b16 %v611
        %v1423 = vunpack.c.l.b16 %v612
        %v1424 = vunpack.c.l.b16 %v613
        %v1425 = vunpack.c.l.b16 %v614
        %v1426 = vunpack.c.l.b16 %v615
        %v1427 = vpack.c.b16 %v1412, %v1411
        %v1428 = vpack.c.b16 %v1414, %v1413
        %v1429 = vpack.c.b16 %v1416, %v1415
        %v1430 = vpack.c.b16 %v1418, %v1417
        %v1431 = vpack.c.b16 %v1420, %v1419
        %v1432 = vpack.c.b16 %v1422, %v1421
        %v1433 = vpack.c.b16 %v1424, %v1423
        %v1434 = vpack.c.b16 %v1426, %v1425
        %v1436 = vsel %vm858, %v1427, 0
        %v1439 = vsel %vm858, %v1428, 0
        %v1442 = vsel %vm858, %v1429, 0
        %v1445 = vsel %vm858, %v1430, 0
        %v1448 = vsel %vm858, %v1431, 0
        %v1451 = vsel %vm858, %v1432, 0
        %v1454 = vsel %vm858, %v1433, 0
        %v1457 = vsel %vm858, %v1434, 0
        %v1460 = vsel %vm940, %v1391, 0
        %1462 = vmatpush.bf16.msra.mxu0 0
        %1463 = vmatpush.bf16.msra.mxu0 0
        %1464 = vmatpush.bf16.msra.mxu0 0
        %1465 = vmatpush.bf16.msra.mxu0 0
        %1466 = vmatpush.bf16.msra.mxu0 0
        %1467 = vmatpush.bf16.msra.mxu0 0
        %1468 = vmatpush.bf16.msra.mxu0 0
        %1469 = vmatpush.bf16.msra.mxu0 %v1460
        %1470 = vmatmul.bf16.gmra.mxu0 %v1436
        %v1471 = vpop.f32.mrf.mxu0
        %v1472 = vadd.f32 %v1394, %v1471
        %v1473 = vpop.f32.mrf.mxu0
        %v1474 = vadd.f32 %v1394, %v1473
        %1475 = vmatmul.bf16.gmra.mxu0 %v1439
        %v1476 = vpop.f32.mrf.mxu0
        %v1477 = vadd.f32 %v1394, %v1476
        %v1478 = vpop.f32.mrf.mxu0
        %v1479 = vadd.f32 %v1394, %v1478
        %1480 = vmatmul.bf16.gmra.mxu0 %v1442
        %v1481 = vpop.f32.mrf.mxu0
        %v1482 = vadd.f32 %v1394, %v1481
        %v1483 = vpop.f32.mrf.mxu0
        %v1484 = vadd.f32 %v1394, %v1483
        %1485 = vmatmul.bf16.gmra.mxu0 %v1445
        %v1486 = vpop.f32.mrf.mxu0
        %v1487 = vadd.f32 %v1394, %v1486
        %v1488 = vpop.f32.mrf.mxu0
        %v1489 = vadd.f32 %v1394, %v1488
        %1490 = vmatmul.bf16.gmra.mxu0 %v1448
        %v1491 = vpop.f32.mrf.mxu0
        %v1492 = vadd.f32 %v1394, %v1491
        %v1493 = vpop.f32.mrf.mxu0
        %v1494 = vadd.f32 %v1394, %v1493
        %1495 = vmatmul.bf16.gmra.mxu0 %v1451
        %v1496 = vpop.f32.mrf.mxu0
        %v1497 = vadd.f32 %v1394, %v1496
        %v1498 = vpop.f32.mrf.mxu0
        %v1499 = vadd.f32 %v1394, %v1498
        %1500 = vmatmul.bf16.gmra.mxu0 %v1454
        %v1501 = vpop.f32.mrf.mxu0
        %v1502 = vadd.f32 %v1394, %v1501
        %v1503 = vpop.f32.mrf.mxu0
        %v1504 = vadd.f32 %v1394, %v1503
        %1505 = vmatmul.bf16.gmra.mxu0 %v1457
        %v1506 = vpop.f32.mrf.mxu0
        %v1507 = vadd.f32 %v1394, %v1506
        %v1508 = vpop.f32.mrf.mxu0
        %v1509 = vadd.f32 %v1394, %v1508
        %1510 = vdwg.mxu0
        %v1511 = vadd.f32 %v1375, %v1472
        %v1512 = vadd.f32 %v1376, %v1474
        %v1513 = vadd.f32 %v1377, %v1477
        %v1514 = vadd.f32 %v1378, %v1479
        %v1515 = vadd.f32 %v1379, %v1482
        %v1516 = vadd.f32 %v1380, %v1484
        %v1517 = vadd.f32 %v1381, %v1487
        %v1518 = vadd.f32 %v1382, %v1489
        %v1519 = vadd.f32 %v1383, %v1492
        %v1520 = vadd.f32 %v1384, %v1494
        %v1521 = vadd.f32 %v1385, %v1497
        %v1522 = vadd.f32 %v1386, %v1499
        %v1523 = vadd.f32 %v1387, %v1502
        %v1524 = vadd.f32 %v1388, %v1504
        %v1525 = vadd.f32 %v1389, %v1507
        %v1526 = vadd.f32 %v1390, %v1509
        %v1527 = vmax.f32 %v1511, 0.0
        %v1528 = vmax.f32 %v1512, 0.0
        %v1529 = vmax.f32 %v1513, 0.0
        %v1530 = vmax.f32 %v1514, 0.0
        %v1531 = vmax.f32 %v1515, 0.0
        %v1532 = vmax.f32 %v1516, 0.0
        %v1533 = vmax.f32 %v1517, 0.0
        %v1534 = vmax.f32 %v1518, 0.0
        %v1535 = vmax.f32 %v1519, 0.0
        %v1536 = vmax.f32 %v1520, 0.0
        %v1537 = vmax.f32 %v1521, 0.0
        %v1538 = vmax.f32 %v1522, 0.0
        %v1539 = vmax.f32 %v1523, 0.0
        %v1540 = vmax.f32 %v1524, 0.0
        %v1541 = vmax.f32 %v1525, 0.0
        %v1542 = vmax.f32 %v1526, 0.0
        %v1543 = vrot.slane %v1527, 4
        %v1544 = vrot.slane %v1528, 4
        %v1545 = vrot.slane %v1529, 4
        %v1546 = vrot.slane %v1530, 4
        %v1547 = vrot.slane %v1531, 4
        %v1548 = vrot.slane %v1532, 4
        %v1549 = vrot.slane %v1533, 4
        %v1550 = vrot.slane %v1534, 4
        %v1551 = vrot.slane %v1535, 4
        %v1552 = vrot.slane %v1536, 4
        %v1553 = vrot.slane %v1537, 4
        %v1554 = vrot.slane %v1538, 4
        %v1555 = vrot.slane %v1539, 4
        %v1556 = vrot.slane %v1540, 4
        %v1557 = vrot.slane %v1541, 4
        %v1558 = vrot.slane %v1542, 4
        %vm1559 = vcmp.lt.s32.totalorder %v200, 4
        %v1560 = vsel %vm1559, %v1557, %v1558
        %v1561 = vsel %vm1559, %v1556, %v1557
        %v1562 = vsel %vm1559, %v1555, %v1556
        %v1563 = vsel %vm1559, %v1554, %v1555
        %v1564 = vsel %vm1559, %v1553, %v1554
        %v1565 = vsel %vm1559, %v1552, %v1553
        %v1566 = vsel %vm1559, %v1551, %v1552
        %v1567 = vsel %vm1559, %v1550, %v1551
        %v1568 = vsel %vm1559, %v1549, %v1550
        %v1569 = vsel %vm1559, %v1548, %v1549
        %v1570 = vsel %vm1559, %v1547, %v1548
        %v1571 = vsel %vm1559, %v1546, %v1547
        %v1572 = vsel %vm1559, %v1545, %v1546
        %v1573 = vsel %vm1559, %v1544, %v1545
        %v1574 = vsel %vm1559, %v1543, %v1544
        %v1575 = vsel %vm1559, %v1558, %v1543
        %v1576 = vmul.f32 %v1575, %v536
        %v1577 = vmul.f32 %v1574, %v537
        %v1578 = vmul.f32 %v1573, %v538
        %v1579 = vmul.f32 %v1572, %v539
        %v1580 = vmul.f32 %v1571, %v540
        %v1581 = vmul.f32 %v1570, %v541
        %v1582 = vmul.f32 %v1569, %v542
        %v1583 = vmul.f32 %v1568, %v543
        %v1584 = vmul.f32 %v1567, %v544
        %v1585 = vmul.f32 %v1566, %v545
        %v1586 = vmul.f32 %v1565, %v546
        %v1587 = vmul.f32 %v1564, %v547
        %v1588 = vmul.f32 %v1563, %v548
        %v1589 = vmul.f32 %v1562, %v549
        %v1590 = vmul.f32 %v1561, %v550
        %v1591 = vmul.f32 %v1560, %v551
        %v1592 = vrot.slane %v1527, 6
        %v1593 = vrot.slane %v1528, 6
        %v1594 = vrot.slane %v1529, 6
        %v1595 = vrot.slane %v1530, 6
        %v1596 = vrot.slane %v1531, 6
        %v1597 = vrot.slane %v1532, 6
        %v1598 = vrot.slane %v1533, 6
        %v1599 = vrot.slane %v1534, 6
        %v1600 = vrot.slane %v1535, 6
        %v1601 = vrot.slane %v1536, 6
        %v1602 = vrot.slane %v1537, 6
        %v1603 = vrot.slane %v1538, 6
        %v1604 = vrot.slane %v1539, 6
        %v1605 = vrot.slane %v1540, 6
        %v1606 = vrot.slane %v1541, 6
        %v1607 = vrot.slane %v1542, 6
        %v1608 = vsel %vm648, %v1606, %v1607
        %v1609 = vsel %vm648, %v1605, %v1606
        %v1610 = vsel %vm648, %v1604, %v1605
        %v1611 = vsel %vm648, %v1603, %v1604
        %v1612 = vsel %vm648, %v1602, %v1603
        %v1613 = vsel %vm648, %v1601, %v1602
        %v1614 = vsel %vm648, %v1600, %v1601
        %v1615 = vsel %vm648, %v1599, %v1600
        %v1616 = vsel %vm648, %v1598, %v1599
        %v1617 = vsel %vm648, %v1597, %v1598
        %v1618 = vsel %vm648, %v1596, %v1597
        %v1619 = vsel %vm648, %v1595, %v1596
        %v1620 = vsel %vm648, %v1594, %v1595
        %v1621 = vsel %vm648, %v1593, %v1594
        %v1622 = vsel %vm648, %v1592, %v1593
        %v1623 = vsel %vm648, %v1607, %v1592
        %v1624 = vmul.f32 %v1623, %v488
        %v1625 = vmul.f32 %v1622, %v489
        %v1626 = vmul.f32 %v1621, %v490
        %v1627 = vmul.f32 %v1620, %v491
        %v1628 = vmul.f32 %v1619, %v492
        %v1629 = vmul.f32 %v1618, %v493
        %v1630 = vmul.f32 %v1617, %v494
        %v1631 = vmul.f32 %v1616, %v495
        %v1632 = vmul.f32 %v1615, %v496
        %v1633 = vmul.f32 %v1614, %v497
        %v1634 = vmul.f32 %v1613, %v498
        %v1635 = vmul.f32 %v1612, %v499
        %v1636 = vmul.f32 %v1611, %v500
        %v1637 = vmul.f32 %v1610, %v501
        %v1638 = vmul.f32 %v1609, %v502
        %v1639 = vmul.f32 %v1608, %v503
        %1656 = vrot.lane.b32.xlu0 %v1624, 16
        %v1657 = vpop.permute.xlu0 %1656
        %1658 = vrot.lane.b32.xlu0 %v1625, 16
        %v1659 = vpop.permute.xlu0 %1658
        %1660 = vrot.lane.b32.xlu0 %v1626, 16
        %v1661 = vpop.permute.xlu0 %1660
        %1662 = vrot.lane.b32.xlu0 %v1627, 16
        %v1663 = vpop.permute.xlu0 %1662
        %1664 = vrot.lane.b32.xlu0 %v1628, 16
        %v1665 = vpop.permute.xlu0 %1664
        %1666 = vrot.lane.b32.xlu0 %v1629, 16
        %v1667 = vpop.permute.xlu0 %1666
        %1668 = vrot.lane.b32.xlu0 %v1630, 16
        %v1669 = vpop.permute.xlu0 %1668
        %1670 = vrot.lane.b32.xlu0 %v1631, 16
        %v1671 = vpop.permute.xlu0 %1670
        %1672 = vrot.lane.b32.xlu0 %v1632, 16
        %v1673 = vpop.permute.xlu0 %1672
        %1674 = vrot.lane.b32.xlu0 %v1633, 16
        %v1675 = vpop.permute.xlu0 %1674
        %1676 = vrot.lane.b32.xlu0 %v1634, 16
        %v1677 = vpop.permute.xlu0 %1676
        %1678 = vrot.lane.b32.xlu0 %v1635, 16
        %v1679 = vpop.permute.xlu0 %1678
        %1680 = vrot.lane.b32.xlu0 %v1636, 16
        %v1681 = vpop.permute.xlu0 %1680
        %1682 = vrot.lane.b32.xlu0 %v1637, 16
        %v1683 = vpop.permute.xlu0 %1682
        %1684 = vrot.lane.b32.xlu0 %v1638, 16
        %v1685 = vpop.permute.xlu0 %1684
        %1686 = vrot.lane.b32.xlu0 %v1639, 16
        %v1687 = vpop.permute.xlu0 %1686
        %1720 = vrot.lane.b32.xlu0 %v1527, 32
        %v1721 = vpop.permute.xlu0 %1720
        %1722 = vrot.lane.b32.xlu0 %v1528, 32
        %v1723 = vpop.permute.xlu0 %1722
        %1724 = vrot.lane.b32.xlu0 %v1529, 32
        %v1725 = vpop.permute.xlu0 %1724
        %1726 = vrot.lane.b32.xlu0 %v1530, 32
        %v1727 = vpop.permute.xlu0 %1726
        %1728 = vrot.lane.b32.xlu0 %v1531, 32
        %v1729 = vpop.permute.xlu0 %1728
        %1730 = vrot.lane.b32.xlu0 %v1532, 32
        %v1731 = vpop.permute.xlu0 %1730
        %1732 = vrot.lane.b32.xlu0 %v1533, 32
        %v1733 = vpop.permute.xlu0 %1732
        %1734 = vrot.lane.b32.xlu0 %v1534, 32
        %v1735 = vpop.permute.xlu0 %1734
        %1736 = vrot.lane.b32.xlu0 %v1535, 32
        %v1737 = vpop.permute.xlu0 %1736
        %1738 = vrot.lane.b32.xlu0 %v1536, 32
        %v1739 = vpop.permute.xlu0 %1738
        %1740 = vrot.lane.b32.xlu0 %v1537, 32
        %v1741 = vpop.permute.xlu0 %1740
        %1742 = vrot.lane.b32.xlu0 %v1538, 32
        %v1743 = vpop.permute.xlu0 %1742
        %1744 = vrot.lane.b32.xlu0 %v1539, 32
        %v1745 = vpop.permute.xlu0 %1744
        %1746 = vrot.lane.b32.xlu0 %v1540, 32
        %v1747 = vpop.permute.xlu0 %1746
        %1748 = vrot.lane.b32.xlu0 %v1541, 32
        %v1749 = vpop.permute.xlu0 %1748
        %1750 = vrot.lane.b32.xlu0 %v1542, 32
        %v1751 = vpop.permute.xlu0 %1750
        %v1768 = vsel %vm875, %v1576, %v1657
        %v1769 = vsel %vm875, %v1577, %v1659
        %v1770 = vsel %vm875, %v1578, %v1661
        %v1771 = vsel %vm875, %v1579, %v1663
        %v1772 = vsel %vm875, %v1580, %v1665
        %v1773 = vsel %vm875, %v1581, %v1667
        %v1774 = vsel %vm875, %v1582, %v1669
        %v1775 = vsel %vm875, %v1583, %v1671
        %v1776 = vsel %vm875, %v1584, %v1673
        %v1777 = vsel %vm875, %v1585, %v1675
        %v1778 = vsel %vm875, %v1586, %v1677
        %v1779 = vsel %vm875, %v1587, %v1679
        %v1780 = vsel %vm875, %v1588, %v1681
        %v1781 = vsel %vm875, %v1589, %v1683
        %v1782 = vsel %vm875, %v1590, %v1685
        %v1783 = vsel %vm875, %v1591, %v1687
        %v1784 = vsel %vm1249, %v1768, %v1721
        %v1785 = vsel %vm1249, %v1769, %v1723
        %v1786 = vsel %vm1249, %v1770, %v1725
        %v1787 = vsel %vm1249, %v1771, %v1727
        %v1788 = vsel %vm1249, %v1772, %v1729
        %v1789 = vsel %vm1249, %v1773, %v1731
        %v1790 = vsel %vm1249, %v1774, %v1733
        %v1791 = vsel %vm1249, %v1775, %v1735
        %v1792 = vsel %vm1249, %v1776, %v1737
        %v1793 = vsel %vm1249, %v1777, %v1739
        %v1794 = vsel %vm1249, %v1778, %v1741
        %v1795 = vsel %vm1249, %v1779, %v1743
        %v1796 = vsel %vm1249, %v1780, %v1745
        %v1797 = vsel %vm1249, %v1781, %v1747
        %v1798 = vsel %vm1249, %v1782, %v1749
        %v1799 = vsel %vm1249, %v1783, %v1751
        %v1800 = vpack.c.bf16 %v1785, %v1784
        %v1801 = vpack.c.bf16 %v1787, %v1786
        %v1802 = vpack.c.bf16 %v1789, %v1788
        %v1803 = vpack.c.bf16 %v1791, %v1790
        %v1804 = vpack.c.bf16 %v1793, %v1792
        %v1805 = vpack.c.bf16 %v1795, %v1794
        %v1806 = vpack.c.bf16 %v1797, %v1796
        %v1807 = vpack.c.bf16 %v1799, %v1798
        %v1808 = vld [vmem:[%s1 + $0x34] sm:$0xf]
        %v1809 = vld [vmem:[%s1 + $0x38] sm:$0xf]
        %v1810 = vld [vmem:[%s1 + $0x3c] sm:$0xf]
        %v1811 = vld [vmem:[%s1 + $0x40] sm:$0xf]
        %v1812 = vld [vmem:[%s1 + $0x44] sm:$0xf]
        %v1813 = vld [vmem:[%s1 + $0x48] sm:$0xf]
        %v1814 = vld [vmem:[%s1 + $0x4c] sm:$0x1]
        %v1815 = vunpack.c.l.bf16 %v1814
        %v1816 = vperm.slane %v1815, 0
        %v1823 = vunpack.c.l.b16 %v1808
        %v1824 = vunpack.c.l.b16 %v1809
        %v1825 = vunpack.c.l.b16 %v1810
        %v1826 = vunpack.c.l.b16 %v1811
        %v1827 = vunpack.c.l.b16 %v1812
        %v1828 = vunpack.c.l.b16 %v1813
        %v1829 = vpack.c.b16 %v1824, %v1823
        %v1830 = vpack.c.b16 %v1826, %v1825
        %v1831 = vpack.c.b16 %v1828, %v1827
        %v1836 = vsel %vm1301, %v1800, 0
        %v1839 = vsel %vm1301, %v1801, 0
        %v1842 = vsel %vm1301, %v1802, 0
        %v1845 = vsel %vm1301, %v1803, 0
        %v1848 = vsel %vm1301, %v1804, 0
        %v1851 = vsel %vm1301, %v1805, 0
        %v1854 = vsel %vm1301, %v1806, 0
        %v1857 = vsel %vm1301, %v1807, 0
        %1859 = vmatpush.bf16.msra.mxu0 0
        %1860 = vmatpush.bf16.msra.mxu0 0
        %1861 = vmatpush.bf16.msra.mxu0 0
        %1862 = vmatpush.bf16.msra.mxu0 0
        %1863 = vmatpush.bf16.msra.mxu0 0
        %1864 = vmatpush.bf16.msra.mxu0 %v1831
        %1865 = vmatpush.bf16.msra.mxu0 %v1830
        %1866 = vmatpush.bf16.msra.mxu0 %v1829
        %1867 = vmatmul.bf16.gmra.mxu0 %v1836
        %v1868 = vpop.f32.mrf.mxu0
        %v1869 = vadd.f32 %v1816, %v1868
        %v1870 = vpop.f32.mrf.mxu0
        %v1871 = vadd.f32 %v1816, %v1870
        %1872 = vmatmul.bf16.gmra.mxu0 %v1839
        %v1873 = vpop.f32.mrf.mxu0
        %v1874 = vadd.f32 %v1816, %v1873
        %v1875 = vpop.f32.mrf.mxu0
        %v1876 = vadd.f32 %v1816, %v1875
        %1877 = vmatmul.bf16.gmra.mxu0 %v1842
        %v1878 = vpop.f32.mrf.mxu0
        %v1879 = vadd.f32 %v1816, %v1878
        %v1880 = vpop.f32.mrf.mxu0
        %v1881 = vadd.f32 %v1816, %v1880
        %1882 = vmatmul.bf16.gmra.mxu0 %v1845
        %v1883 = vpop.f32.mrf.mxu0
        %v1884 = vadd.f32 %v1816, %v1883
        %v1885 = vpop.f32.mrf.mxu0
        %v1886 = vadd.f32 %v1816, %v1885
        %1887 = vmatmul.bf16.gmra.mxu0 %v1848
        %v1888 = vpop.f32.mrf.mxu0
        %v1889 = vadd.f32 %v1816, %v1888
        %v1890 = vpop.f32.mrf.mxu0
        %v1891 = vadd.f32 %v1816, %v1890
        %1892 = vmatmul.bf16.gmra.mxu0 %v1851
        %v1893 = vpop.f32.mrf.mxu0
        %v1894 = vadd.f32 %v1816, %v1893
        %v1895 = vpop.f32.mrf.mxu0
        %v1896 = vadd.f32 %v1816, %v1895
        %1897 = vmatmul.bf16.gmra.mxu0 %v1854
        %v1898 = vpop.f32.mrf.mxu0
        %v1899 = vadd.f32 %v1816, %v1898
        %v1900 = vpop.f32.mrf.mxu0
        %v1901 = vadd.f32 %v1816, %v1900
        %1902 = vmatmul.bf16.gmra.mxu0 %v1857
        %v1903 = vpop.f32.mrf.mxu0
        %v1904 = vadd.f32 %v1816, %v1903
        %v1905 = vpop.f32.mrf.mxu0
        %v1906 = vadd.f32 %v1816, %v1905
        %1907 = vdwg.mxu0
        %v1908 = vmax.f32 %v1869, 0.0
        %v1909 = vmax.f32 %v1871, 0.0
        %v1910 = vmax.f32 %v1874, 0.0
        %v1911 = vmax.f32 %v1876, 0.0
        %v1912 = vmax.f32 %v1879, 0.0
        %v1913 = vmax.f32 %v1881, 0.0
        %v1914 = vmax.f32 %v1884, 0.0
        %v1915 = vmax.f32 %v1886, 0.0
        %v1916 = vmax.f32 %v1889, 0.0
        %v1917 = vmax.f32 %v1891, 0.0
        %v1918 = vmax.f32 %v1894, 0.0
        %v1919 = vmax.f32 %v1896, 0.0
        %v1920 = vmax.f32 %v1899, 0.0
        %v1921 = vmax.f32 %v1901, 0.0
        %v1922 = vmax.f32 %v1904, 0.0
        %v1923 = vmax.f32 %v1906, 0.0
        %v1924 = vrot.slane %v1908, 4
        %v1925 = vrot.slane %v1909, 4
        %v1926 = vrot.slane %v1910, 4
        %v1927 = vrot.slane %v1911, 4
        %v1928 = vrot.slane %v1912, 4
        %v1929 = vrot.slane %v1913, 4
        %v1930 = vrot.slane %v1914, 4
        %v1931 = vrot.slane %v1915, 4
        %v1932 = vrot.slane %v1916, 4
        %v1933 = vrot.slane %v1917, 4
        %v1934 = vrot.slane %v1918, 4
        %v1935 = vrot.slane %v1919, 4
        %v1936 = vrot.slane %v1920, 4
        %v1937 = vrot.slane %v1921, 4
        %v1938 = vrot.slane %v1922, 4
        %v1939 = vrot.slane %v1923, 4
        %v1940 = vsel %vm1559, %v1938, %v1939
        %v1941 = vsel %vm1559, %v1937, %v1938
        %v1942 = vsel %vm1559, %v1936, %v1937
        %v1943 = vsel %vm1559, %v1935, %v1936
        %v1944 = vsel %vm1559, %v1934, %v1935
        %v1945 = vsel %vm1559, %v1933, %v1934
        %v1946 = vsel %vm1559, %v1932, %v1933
        %v1947 = vsel %vm1559, %v1931, %v1932
        %v1948 = vsel %vm1559, %v1930, %v1931
        %v1949 = vsel %vm1559, %v1929, %v1930
        %v1950 = vsel %vm1559, %v1928, %v1929
        %v1951 = vsel %vm1559, %v1927, %v1928
        %v1952 = vsel %vm1559, %v1926, %v1927
        %v1953 = vsel %vm1559, %v1925, %v1926
        %v1954 = vsel %vm1559, %v1924, %v1925
        %v1955 = vsel %vm1559, %v1939, %v1924
        %v1956 = vmul.f32 %v1955, %v536
        %v1957 = vmul.f32 %v1954, %v537
        %v1958 = vmul.f32 %v1953, %v538
        %v1959 = vmul.f32 %v1952, %v539
        %v1960 = vmul.f32 %v1951, %v540
        %v1961 = vmul.f32 %v1950, %v541
        %v1962 = vmul.f32 %v1949, %v542
        %v1963 = vmul.f32 %v1948, %v543
        %v1964 = vmul.f32 %v1947, %v544
        %v1965 = vmul.f32 %v1946, %v545
        %v1966 = vmul.f32 %v1945, %v546
        %v1967 = vmul.f32 %v1944, %v547
        %v1968 = vmul.f32 %v1943, %v548
        %v1969 = vmul.f32 %v1942, %v549
        %v1970 = vmul.f32 %v1941, %v550
        %v1971 = vmul.f32 %v1940, %v551
        %v1972 = vrot.slane %v1908, 6
        %v1973 = vrot.slane %v1909, 6
        %v1974 = vrot.slane %v1910, 6
        %v1975 = vrot.slane %v1911, 6
        %v1976 = vrot.slane %v1912, 6
        %v1977 = vrot.slane %v1913, 6
        %v1978 = vrot.slane %v1914, 6
        %v1979 = vrot.slane %v1915, 6
        %v1980 = vrot.slane %v1916, 6
        %v1981 = vrot.slane %v1917, 6
        %v1982 = vrot.slane %v1918, 6
        %v1983 = vrot.slane %v1919, 6
        %v1984 = vrot.slane %v1920, 6
        %v1985 = vrot.slane %v1921, 6
        %v1986 = vrot.slane %v1922, 6
        %v1987 = vrot.slane %v1923, 6
        %v1988 = vsel %vm648, %v1986, %v1987
        %v1989 = vsel %vm648, %v1985, %v1986
        %v1990 = vsel %vm648, %v1984, %v1985
        %v1991 = vsel %vm648, %v1983, %v1984
        %v1992 = vsel %vm648, %v1982, %v1983
        %v1993 = vsel %vm648, %v1981, %v1982
        %v1994 = vsel %vm648, %v1980, %v1981
        %v1995 = vsel %vm648, %v1979, %v1980
        %v1996 = vsel %vm648, %v1978, %v1979
        %v1997 = vsel %vm648, %v1977, %v1978
        %v1998 = vsel %vm648, %v1976, %v1977
        %v1999 = vsel %vm648, %v1975, %v1976
        %v2000 = vsel %vm648, %v1974, %v1975
        %v2001 = vsel %vm648, %v1973, %v1974
        %v2002 = vsel %vm648, %v1972, %v1973
        %v2003 = vsel %vm648, %v1987, %v1972
        %v2004 = vmul.f32 %v2003, %v488
        %v2005 = vmul.f32 %v2002, %v489
        %v2006 = vmul.f32 %v2001, %v490
        %v2007 = vmul.f32 %v2000, %v491
        %v2008 = vmul.f32 %v1999, %v492
        %v2009 = vmul.f32 %v1998, %v493
        %v2010 = vmul.f32 %v1997, %v494
        %v2011 = vmul.f32 %v1996, %v495
        %v2012 = vmul.f32 %v1995, %v496
        %v2013 = vmul.f32 %v1994, %v497
        %v2014 = vmul.f32 %v1993, %v498
        %v2015 = vmul.f32 %v1992, %v499
        %v2016 = vmul.f32 %v1991, %v500
        %v2017 = vmul.f32 %v1990, %v501
        %v2018 = vmul.f32 %v1989, %v502
        %v2019 = vmul.f32 %v1988, %v503
        %2036 = vrot.lane.b32.xlu0 %v2004, 16
        %v2037 = vpop.permute.xlu0 %2036
        %2038 = vrot.lane.b32.xlu0 %v2005, 16
        %v2039 = vpop.permute.xlu0 %2038
        %2040 = vrot.lane.b32.xlu0 %v2006, 16
        %v2041 = vpop.permute.xlu0 %2040
        %2042 = vrot.lane.b32.xlu0 %v2007, 16
        %v2043 = vpop.permute.xlu0 %2042
        %2044 = vrot.lane.b32.xlu0 %v2008, 16
        %v2045 = vpop.permute.xlu0 %2044
        %2046 = vrot.lane.b32.xlu0 %v2009, 16
        %v2047 = vpop.permute.xlu0 %2046
        %2048 = vrot.lane.b32.xlu0 %v2010, 16
        %v2049 = vpop.permute.xlu0 %2048
        %2050 = vrot.lane.b32.xlu0 %v2011, 16
        %v2051 = vpop.permute.xlu0 %2050
        %2052 = vrot.lane.b32.xlu0 %v2012, 16
        %v2053 = vpop.permute.xlu0 %2052
        %2054 = vrot.lane.b32.xlu0 %v2013, 16
        %v2055 = vpop.permute.xlu0 %2054
        %2056 = vrot.lane.b32.xlu0 %v2014, 16
        %v2057 = vpop.permute.xlu0 %2056
        %2058 = vrot.lane.b32.xlu0 %v2015, 16
        %v2059 = vpop.permute.xlu0 %2058
        %2060 = vrot.lane.b32.xlu0 %v2016, 16
        %v2061 = vpop.permute.xlu0 %2060
        %2062 = vrot.lane.b32.xlu0 %v2017, 16
        %v2063 = vpop.permute.xlu0 %2062
        %2064 = vrot.lane.b32.xlu0 %v2018, 16
        %v2065 = vpop.permute.xlu0 %2064
        %2066 = vrot.lane.b32.xlu0 %v2019, 16
        %v2067 = vpop.permute.xlu0 %2066
        %2100 = vrot.lane.b32.xlu0 %v1908, 32
        %v2101 = vpop.permute.xlu0 %2100
        %2102 = vrot.lane.b32.xlu0 %v1909, 32
        %v2103 = vpop.permute.xlu0 %2102
        %2104 = vrot.lane.b32.xlu0 %v1910, 32
        %v2105 = vpop.permute.xlu0 %2104
        %2106 = vrot.lane.b32.xlu0 %v1911, 32
        %v2107 = vpop.permute.xlu0 %2106
        %2108 = vrot.lane.b32.xlu0 %v1912, 32
        %v2109 = vpop.permute.xlu0 %2108
        %2110 = vrot.lane.b32.xlu0 %v1913, 32
        %v2111 = vpop.permute.xlu0 %2110
        %2112 = vrot.lane.b32.xlu0 %v1914, 32
        %v2113 = vpop.permute.xlu0 %2112
        %2114 = vrot.lane.b32.xlu0 %v1915, 32
        %v2115 = vpop.permute.xlu0 %2114
        %2116 = vrot.lane.b32.xlu0 %v1916, 32
        %v2117 = vpop.permute.xlu0 %2116
        %2118 = vrot.lane.b32.xlu0 %v1917, 32
        %v2119 = vpop.permute.xlu0 %2118
        %2120 = vrot.lane.b32.xlu0 %v1918, 32
        %v2121 = vpop.permute.xlu0 %2120
        %2122 = vrot.lane.b32.xlu0 %v1919, 32
        %v2123 = vpop.permute.xlu0 %2122
        %2124 = vrot.lane.b32.xlu0 %v1920, 32
        %v2125 = vpop.permute.xlu0 %2124
        %2126 = vrot.lane.b32.xlu0 %v1921, 32
        %v2127 = vpop.permute.xlu0 %2126
        %2128 = vrot.lane.b32.xlu0 %v1922, 32
        %v2129 = vpop.permute.xlu0 %2128
        %2130 = vrot.lane.b32.xlu0 %v1923, 32
        %v2131 = vpop.permute.xlu0 %2130
        %v2148 = vsel %vm875, %v1956, %v2037
        %v2149 = vsel %vm875, %v1957, %v2039
        %v2150 = vsel %vm875, %v1958, %v2041
        %v2151 = vsel %vm875, %v1959, %v2043
        %v2152 = vsel %vm875, %v1960, %v2045
        %v2153 = vsel %vm875, %v1961, %v2047
        %v2154 = vsel %vm875, %v1962, %v2049
        %v2155 = vsel %vm875, %v1963, %v2051
        %v2156 = vsel %vm875, %v1964, %v2053
        %v2157 = vsel %vm875, %v1965, %v2055
        %v2158 = vsel %vm875, %v1966, %v2057
        %v2159 = vsel %vm875, %v1967, %v2059
        %v2160 = vsel %vm875, %v1968, %v2061
        %v2161 = vsel %vm875, %v1969, %v2063
        %v2162 = vsel %vm875, %v1970, %v2065
        %v2163 = vsel %vm875, %v1971, %v2067
        %v2164 = vsel %vm1249, %v2148, %v2101
        %v2165 = vsel %vm1249, %v2149, %v2103
        %v2166 = vsel %vm1249, %v2150, %v2105
        %v2167 = vsel %vm1249, %v2151, %v2107
        %v2168 = vsel %vm1249, %v2152, %v2109
        %v2169 = vsel %vm1249, %v2153, %v2111
        %v2170 = vsel %vm1249, %v2154, %v2113
        %v2171 = vsel %vm1249, %v2155, %v2115
        %v2172 = vsel %vm1249, %v2156, %v2117
        %v2173 = vsel %vm1249, %v2157, %v2119
        %v2174 = vsel %vm1249, %v2158, %v2121
        %v2175 = vsel %vm1249, %v2159, %v2123
        %v2176 = vsel %vm1249, %v2160, %v2125
        %v2177 = vsel %vm1249, %v2161, %v2127
        %v2178 = vsel %vm1249, %v2162, %v2129
        %v2179 = vsel %vm1249, %v2163, %v2131
        %v2180 = vpack.c.bf16 %v2165, %v2164
        %v2181 = vpack.c.bf16 %v2167, %v2166
        %v2182 = vpack.c.bf16 %v2169, %v2168
        %v2183 = vpack.c.bf16 %v2171, %v2170
        %v2184 = vpack.c.bf16 %v2173, %v2172
        %v2185 = vpack.c.bf16 %v2175, %v2174
        %v2186 = vpack.c.bf16 %v2177, %v2176
        %v2187 = vpack.c.bf16 %v2179, %v2178
        %v2188 = vld [vmem:[%s1 + $0x50] sm:$0xf]
        %v2189 = vld [vmem:[%s1 + $0x54] sm:$0xf]
        %v2190 = vld [vmem:[%s1 + $0x58] sm:$0xf]
        %v2191 = vld [vmem:[%s1 + $0x5c] sm:$0xf]
        %v2192 = vld [vmem:[%s1 + $0x60] sm:$0xf]
        %v2193 = vld [vmem:[%s1 + $0x64] sm:$0xf]
        %v2194 = vld [vmem:[%s1 + $0x68] sm:$0x1]
        %v2195 = vunpack.c.l.bf16 %v2194
        %v2196 = vperm.slane %v2195, 0
        %v2203 = vunpack.c.l.b16 %v2188
        %v2204 = vunpack.c.l.b16 %v2189
        %v2205 = vunpack.c.l.b16 %v2190
        %v2206 = vunpack.c.l.b16 %v2191
        %v2207 = vunpack.c.l.b16 %v2192
        %v2208 = vunpack.c.l.b16 %v2193
        %v2209 = vpack.c.b16 %v2204, %v2203
        %v2210 = vpack.c.b16 %v2206, %v2205
        %v2211 = vpack.c.b16 %v2208, %v2207
        %v2216 = vsel %vm1301, %v2180, 0
        %v2219 = vsel %vm1301, %v2181, 0
        %v2222 = vsel %vm1301, %v2182, 0
        %v2225 = vsel %vm1301, %v2183, 0
        %v2228 = vsel %vm1301, %v2184, 0
        %v2231 = vsel %vm1301, %v2185, 0
        %v2234 = vsel %vm1301, %v2186, 0
        %v2237 = vsel %vm1301, %v2187, 0
        %2239 = vmatpush.bf16.msra.mxu0 0
        %2240 = vmatpush.bf16.msra.mxu0 0
        %2241 = vmatpush.bf16.msra.mxu0 0
        %2242 = vmatpush.bf16.msra.mxu0 0
        %2243 = vmatpush.bf16.msra.mxu0 0
        %2244 = vmatpush.bf16.msra.mxu0 %v2211
        %2245 = vmatpush.bf16.msra.mxu0 %v2210
        %2246 = vmatpush.bf16.msra.mxu0 %v2209
        %2247 = vmatmul.bf16.gmra.mxu0 %v2216
        %v2248 = vpop.f32.mrf.mxu0
        %v2249 = vadd.f32 %v2196, %v2248
        %v2250 = vpop.f32.mrf.mxu0
        %v2251 = vadd.f32 %v2196, %v2250
        %2252 = vmatmul.bf16.gmra.mxu0 %v2219
        %v2253 = vpop.f32.mrf.mxu0
        %v2254 = vadd.f32 %v2196, %v2253
        %v2255 = vpop.f32.mrf.mxu0
        %v2256 = vadd.f32 %v2196, %v2255
        %2257 = vmatmul.bf16.gmra.mxu0 %v2222
        %v2258 = vpop.f32.mrf.mxu0
        %v2259 = vadd.f32 %v2196, %v2258
        %v2260 = vpop.f32.mrf.mxu0
        %v2261 = vadd.f32 %v2196, %v2260
        %2262 = vmatmul.bf16.gmra.mxu0 %v2225
        %v2263 = vpop.f32.mrf.mxu0
        %v2264 = vadd.f32 %v2196, %v2263
        %v2265 = vpop.f32.mrf.mxu0
        %v2266 = vadd.f32 %v2196, %v2265
        %2267 = vmatmul.bf16.gmra.mxu0 %v2228
        %v2268 = vpop.f32.mrf.mxu0
        %v2269 = vadd.f32 %v2196, %v2268
        %v2270 = vpop.f32.mrf.mxu0
        %v2271 = vadd.f32 %v2196, %v2270
        %2272 = vmatmul.bf16.gmra.mxu0 %v2231
        %v2273 = vpop.f32.mrf.mxu0
        %v2274 = vadd.f32 %v2196, %v2273
        %v2275 = vpop.f32.mrf.mxu0
        %v2276 = vadd.f32 %v2196, %v2275
        %2277 = vmatmul.bf16.gmra.mxu0 %v2234
        %v2278 = vpop.f32.mrf.mxu0
        %v2279 = vadd.f32 %v2196, %v2278
        %v2280 = vpop.f32.mrf.mxu0
        %v2281 = vadd.f32 %v2196, %v2280
        %2282 = vmatmul.bf16.gmra.mxu0 %v2237
        %v2283 = vpop.f32.mrf.mxu0
        %v2284 = vadd.f32 %v2196, %v2283
        %v2285 = vpop.f32.mrf.mxu0
        %v2286 = vadd.f32 %v2196, %v2285
        %2287 = vdwg.mxu0
        %v2288 = vmax.f32 %v2249, 0.0
        %v2289 = vmax.f32 %v2251, 0.0
        %v2290 = vmax.f32 %v2254, 0.0
        %v2291 = vmax.f32 %v2256, 0.0
        %v2292 = vmax.f32 %v2259, 0.0
        %v2293 = vmax.f32 %v2261, 0.0
        %v2294 = vmax.f32 %v2264, 0.0
        %v2295 = vmax.f32 %v2266, 0.0
        %v2296 = vmax.f32 %v2269, 0.0
        %v2297 = vmax.f32 %v2271, 0.0
        %v2298 = vmax.f32 %v2274, 0.0
        %v2299 = vmax.f32 %v2276, 0.0
        %v2300 = vmax.f32 %v2279, 0.0
        %v2301 = vmax.f32 %v2281, 0.0
        %v2302 = vmax.f32 %v2284, 0.0
        %v2303 = vmax.f32 %v2286, 0.0
        %v2304 = vadd.f32 %v2288, %v1527
        %v2305 = vadd.f32 %v2289, %v1528
        %v2306 = vadd.f32 %v2290, %v1529
        %v2307 = vadd.f32 %v2291, %v1530
        %v2308 = vadd.f32 %v2292, %v1531
        %v2309 = vadd.f32 %v2293, %v1532
        %v2310 = vadd.f32 %v2294, %v1533
        %v2311 = vadd.f32 %v2295, %v1534
        %v2312 = vadd.f32 %v2296, %v1535
        %v2313 = vadd.f32 %v2297, %v1536
        %v2314 = vadd.f32 %v2298, %v1537
        %v2315 = vadd.f32 %v2299, %v1538
        %v2316 = vadd.f32 %v2300, %v1539
        %v2317 = vadd.f32 %v2301, %v1540
        %v2318 = vadd.f32 %v2302, %v1541
        %v2319 = vadd.f32 %v2303, %v1542
        %v2320 = vmax.f32 %v2304, 0.0
        %v2321 = vmax.f32 %v2305, 0.0
        %v2322 = vmax.f32 %v2306, 0.0
        %v2323 = vmax.f32 %v2307, 0.0
        %v2324 = vmax.f32 %v2308, 0.0
        %v2325 = vmax.f32 %v2309, 0.0
        %v2326 = vmax.f32 %v2310, 0.0
        %v2327 = vmax.f32 %v2311, 0.0
        %v2328 = vmax.f32 %v2312, 0.0
        %v2329 = vmax.f32 %v2313, 0.0
        %v2330 = vmax.f32 %v2314, 0.0
        %v2331 = vmax.f32 %v2315, 0.0
        %v2332 = vmax.f32 %v2316, 0.0
        %v2333 = vmax.f32 %v2317, 0.0
        %v2334 = vmax.f32 %v2318, 0.0
        %v2335 = vmax.f32 %v2319, 0.0
        %v2336 = vmul.f32 %v2335, %v584
        %v2337 = vmul.f32 %v2320, %v585
        %v2338 = vmul.f32 %v2321, %v586
        %v2339 = vmul.f32 %v2322, %v587
        %v2340 = vmul.f32 %v2323, %v588
        %v2341 = vmul.f32 %v2324, %v589
        %v2342 = vmul.f32 %v2325, %v590
        %v2343 = vmul.f32 %v2326, %v591
        %v2344 = vmul.f32 %v2327, %v592
        %v2345 = vmul.f32 %v2328, %v593
        %v2346 = vmul.f32 %v2329, %v594
        %v2347 = vmul.f32 %v2330, %v595
        %v2348 = vmul.f32 %v2331, %v596
        %v2349 = vmul.f32 %v2332, %v597
        %v2350 = vmul.f32 %v2333, %v598
        %v2351 = vmul.f32 %v2334, %v599
        %v2352 = vrot.slane %v2320, 4
        %v2353 = vrot.slane %v2321, 4
        %v2354 = vrot.slane %v2322, 4
        %v2355 = vrot.slane %v2323, 4
        %v2356 = vrot.slane %v2324, 4
        %v2357 = vrot.slane %v2325, 4
        %v2358 = vrot.slane %v2326, 4
        %v2359 = vrot.slane %v2327, 4
        %v2360 = vrot.slane %v2328, 4
        %v2361 = vrot.slane %v2329, 4
        %v2362 = vrot.slane %v2330, 4
        %v2363 = vrot.slane %v2331, 4
        %v2364 = vrot.slane %v2332, 4
        %v2365 = vrot.slane %v2333, 4
        %v2366 = vrot.slane %v2334, 4
        %v2367 = vrot.slane %v2335, 4
        %v2368 = vsel %vm1559, %v2366, %v2367
        %v2369 = vsel %vm1559, %v2365, %v2366
        %v2370 = vsel %vm1559, %v2364, %v2365
        %v2371 = vsel %vm1559, %v2363, %v2364
        %v2372 = vsel %vm1559, %v2362, %v2363
        %v2373 = vsel %vm1559, %v2361, %v2362
        %v2374 = vsel %vm1559, %v2360, %v2361
        %v2375 = vsel %vm1559, %v2359, %v2360
        %v2376 = vsel %vm1559, %v2358, %v2359
        %v2377 = vsel %vm1559, %v2357, %v2358
        %v2378 = vsel %vm1559, %v2356, %v2357
        %v2379 = vsel %vm1559, %v2355, %v2356
        %v2380 = vsel %vm1559, %v2354, %v2355
        %v2381 = vsel %vm1559, %v2353, %v2354
        %v2382 = vsel %vm1559, %v2352, %v2353
        %v2383 = vsel %vm1559, %v2367, %v2352
        %v2384 = vmul.f32 %v2383, %v536
        %v2385 = vmul.f32 %v2382, %v537
        %v2386 = vmul.f32 %v2381, %v538
        %v2387 = vmul.f32 %v2380, %v539
        %v2388 = vmul.f32 %v2379, %v540
        %v2389 = vmul.f32 %v2378, %v541
        %v2390 = vmul.f32 %v2377, %v542
        %v2391 = vmul.f32 %v2376, %v543
        %v2392 = vmul.f32 %v2375, %v544
        %v2393 = vmul.f32 %v2374, %v545
        %v2394 = vmul.f32 %v2373, %v546
        %v2395 = vmul.f32 %v2372, %v547
        %v2396 = vmul.f32 %v2371, %v548
        %v2397 = vmul.f32 %v2370, %v549
        %v2398 = vmul.f32 %v2369, %v550
        %v2399 = vmul.f32 %v2368, %v551
        %2416 = vrot.lane.b32.xlu0 %v2384, 16
        %v2417 = vpop.permute.xlu0 %2416
        %2418 = vrot.lane.b32.xlu0 %v2385, 16
        %v2419 = vpop.permute.xlu0 %2418
        %2420 = vrot.lane.b32.xlu0 %v2386, 16
        %v2421 = vpop.permute.xlu0 %2420
        %2422 = vrot.lane.b32.xlu0 %v2387, 16
        %v2423 = vpop.permute.xlu0 %2422
        %2424 = vrot.lane.b32.xlu0 %v2388, 16
        %v2425 = vpop.permute.xlu0 %2424
        %2426 = vrot.lane.b32.xlu0 %v2389, 16
        %v2427 = vpop.permute.xlu0 %2426
        %2428 = vrot.lane.b32.xlu0 %v2390, 16
        %v2429 = vpop.permute.xlu0 %2428
        %2430 = vrot.lane.b32.xlu0 %v2391, 16
        %v2431 = vpop.permute.xlu0 %2430
        %2432 = vrot.lane.b32.xlu0 %v2392, 16
        %v2433 = vpop.permute.xlu0 %2432
        %2434 = vrot.lane.b32.xlu0 %v2393, 16
        %v2435 = vpop.permute.xlu0 %2434
        %2436 = vrot.lane.b32.xlu0 %v2394, 16
        %v2437 = vpop.permute.xlu0 %2436
        %2438 = vrot.lane.b32.xlu0 %v2395, 16
        %v2439 = vpop.permute.xlu0 %2438
        %2440 = vrot.lane.b32.xlu0 %v2396, 16
        %v2441 = vpop.permute.xlu0 %2440
        %2442 = vrot.lane.b32.xlu0 %v2397, 16
        %v2443 = vpop.permute.xlu0 %2442
        %2444 = vrot.lane.b32.xlu0 %v2398, 16
        %v2445 = vpop.permute.xlu0 %2444
        %2446 = vrot.lane.b32.xlu0 %v2399, 16
        %v2447 = vpop.permute.xlu0 %2446
        %2480 = vrot.lane.b32.xlu0 %v2320, 32
        %v2481 = vpop.permute.xlu0 %2480
        %2482 = vrot.lane.b32.xlu0 %v2321, 32
        %v2483 = vpop.permute.xlu0 %2482
        %2484 = vrot.lane.b32.xlu0 %v2322, 32
        %v2485 = vpop.permute.xlu0 %2484
        %2486 = vrot.lane.b32.xlu0 %v2323, 32
        %v2487 = vpop.permute.xlu0 %2486
        %2488 = vrot.lane.b32.xlu0 %v2324, 32
        %v2489 = vpop.permute.xlu0 %2488
        %2490 = vrot.lane.b32.xlu0 %v2325, 32
        %v2491 = vpop.permute.xlu0 %2490
        %2492 = vrot.lane.b32.xlu0 %v2326, 32
        %v2493 = vpop.permute.xlu0 %2492
        %2494 = vrot.lane.b32.xlu0 %v2327, 32
        %v2495 = vpop.permute.xlu0 %2494
        %2496 = vrot.lane.b32.xlu0 %v2328, 32
        %v2497 = vpop.permute.xlu0 %2496
        %2498 = vrot.lane.b32.xlu0 %v2329, 32
        %v2499 = vpop.permute.xlu0 %2498
        %2500 = vrot.lane.b32.xlu0 %v2330, 32
        %v2501 = vpop.permute.xlu0 %2500
        %2502 = vrot.lane.b32.xlu0 %v2331, 32
        %v2503 = vpop.permute.xlu0 %2502
        %2504 = vrot.lane.b32.xlu0 %v2332, 32
        %v2505 = vpop.permute.xlu0 %2504
        %2506 = vrot.lane.b32.xlu0 %v2333, 32
        %v2507 = vpop.permute.xlu0 %2506
        %2508 = vrot.lane.b32.xlu0 %v2334, 32
        %v2509 = vpop.permute.xlu0 %2508
        %2510 = vrot.lane.b32.xlu0 %v2335, 32
        %v2511 = vpop.permute.xlu0 %2510
        %v2528 = vsel %vm875, %v2336, %v2417
        %v2529 = vsel %vm875, %v2337, %v2419
        %v2530 = vsel %vm875, %v2338, %v2421
        %v2531 = vsel %vm875, %v2339, %v2423
        %v2532 = vsel %vm875, %v2340, %v2425
        %v2533 = vsel %vm875, %v2341, %v2427
        %v2534 = vsel %vm875, %v2342, %v2429
        %v2535 = vsel %vm875, %v2343, %v2431
        %v2536 = vsel %vm875, %v2344, %v2433
        %v2537 = vsel %vm875, %v2345, %v2435
        %v2538 = vsel %vm875, %v2346, %v2437
        %v2539 = vsel %vm875, %v2347, %v2439
        %v2540 = vsel %vm875, %v2348, %v2441
        %v2541 = vsel %vm875, %v2349, %v2443
        %v2542 = vsel %vm875, %v2350, %v2445
        %v2543 = vsel %vm875, %v2351, %v2447
        %v2544 = vsel %vm1249, %v2528, %v2481
        %v2545 = vsel %vm1249, %v2529, %v2483
        %v2546 = vsel %vm1249, %v2530, %v2485
        %v2547 = vsel %vm1249, %v2531, %v2487
        %v2548 = vsel %vm1249, %v2532, %v2489
        %v2549 = vsel %vm1249, %v2533, %v2491
        %v2550 = vsel %vm1249, %v2534, %v2493
        %v2551 = vsel %vm1249, %v2535, %v2495
        %v2552 = vsel %vm1249, %v2536, %v2497
        %v2553 = vsel %vm1249, %v2537, %v2499
        %v2554 = vsel %vm1249, %v2538, %v2501
        %v2555 = vsel %vm1249, %v2539, %v2503
        %v2556 = vsel %vm1249, %v2540, %v2505
        %v2557 = vsel %vm1249, %v2541, %v2507
        %v2558 = vsel %vm1249, %v2542, %v2509
        %v2559 = vsel %vm1249, %v2543, %v2511
        %v2560 = vpack.c.bf16 %v2545, %v2544
        %v2561 = vpack.c.bf16 %v2547, %v2546
        %v2562 = vpack.c.bf16 %v2549, %v2548
        %v2563 = vpack.c.bf16 %v2551, %v2550
        %v2564 = vpack.c.bf16 %v2553, %v2552
        %v2565 = vpack.c.bf16 %v2555, %v2554
        %v2566 = vpack.c.bf16 %v2557, %v2556
        %v2567 = vpack.c.bf16 %v2559, %v2558
        %v2568 = vld [vmem:[%s1 + $0x6c] sm:$0xf]
        %v2569 = vld [vmem:[%s1 + $0x70] sm:$0xf]
        %v2570 = vld [vmem:[%s1 + $0x74] sm:$0xf]
        %v2571 = vld [vmem:[%s1 + $0x78] sm:$0xf]
        %v2572 = vld [vmem:[%s1 + $0x7c] sm:$0xf]
        %v2573 = vld [vmem:[%s1 + $0x80] sm:$0xf]
        %v2574 = vld [vmem:[%s1 + $0x84] sm:$0x1]
        %v2575 = vunpack.c.l.bf16 %v2574
        %v2576 = vperm.slane %v2575, 0
        %v2583 = vunpack.c.l.b16 %v2568
        %v2584 = vunpack.c.l.b16 %v2569
        %v2585 = vunpack.c.l.b16 %v2570
        %v2586 = vunpack.c.l.b16 %v2571
        %v2587 = vunpack.c.l.b16 %v2572
        %v2588 = vunpack.c.l.b16 %v2573
        %v2589 = vpack.c.b16 %v2584, %v2583
        %v2590 = vpack.c.b16 %v2586, %v2585
        %v2591 = vpack.c.b16 %v2588, %v2587
        %v2596 = vsel %vm1301, %v2560, 0
        %v2599 = vsel %vm1301, %v2561, 0
        %v2602 = vsel %vm1301, %v2562, 0
        %v2605 = vsel %vm1301, %v2563, 0
        %v2608 = vsel %vm1301, %v2564, 0
        %v2611 = vsel %vm1301, %v2565, 0
        %v2614 = vsel %vm1301, %v2566, 0
        %v2617 = vsel %vm1301, %v2567, 0
        %2619 = vmatpush.bf16.msra.mxu0 0
        %2620 = vmatpush.bf16.msra.mxu0 0
        %2621 = vmatpush.bf16.msra.mxu0 0
        %2622 = vmatpush.bf16.msra.mxu0 0
        %2623 = vmatpush.bf16.msra.mxu0 0
        %2624 = vmatpush.bf16.msra.mxu0 %v2591
        %2625 = vmatpush.bf16.msra.mxu0 %v2590
        %2626 = vmatpush.bf16.msra.mxu0 %v2589
        %2627 = vmatmul.bf16.gmra.mxu0 %v2596
        %v2628 = vpop.f32.mrf.mxu0
        %v2629 = vadd.f32 %v2576, %v2628
        %v2630 = vpop.f32.mrf.mxu0
        %v2631 = vadd.f32 %v2576, %v2630
        %2632 = vmatmul.bf16.gmra.mxu0 %v2599
        %v2633 = vpop.f32.mrf.mxu0
        %v2634 = vadd.f32 %v2576, %v2633
        %v2635 = vpop.f32.mrf.mxu0
        %v2636 = vadd.f32 %v2576, %v2635
        %2637 = vmatmul.bf16.gmra.mxu0 %v2602
        %v2638 = vpop.f32.mrf.mxu0
        %v2639 = vadd.f32 %v2576, %v2638
        %v2640 = vpop.f32.mrf.mxu0
        %v2641 = vadd.f32 %v2576, %v2640
        %2642 = vmatmul.bf16.gmra.mxu0 %v2605
        %v2643 = vpop.f32.mrf.mxu0
        %v2644 = vadd.f32 %v2576, %v2643
        %v2645 = vpop.f32.mrf.mxu0
        %v2646 = vadd.f32 %v2576, %v2645
        %2647 = vmatmul.bf16.gmra.mxu0 %v2608
        %v2648 = vpop.f32.mrf.mxu0
        %v2649 = vadd.f32 %v2576, %v2648
        %v2650 = vpop.f32.mrf.mxu0
        %v2651 = vadd.f32 %v2576, %v2650
        %2652 = vmatmul.bf16.gmra.mxu0 %v2611
        %v2653 = vpop.f32.mrf.mxu0
        %v2654 = vadd.f32 %v2576, %v2653
        %v2655 = vpop.f32.mrf.mxu0
        %v2656 = vadd.f32 %v2576, %v2655
        %2657 = vmatmul.bf16.gmra.mxu0 %v2614
        %v2658 = vpop.f32.mrf.mxu0
        %v2659 = vadd.f32 %v2576, %v2658
        %v2660 = vpop.f32.mrf.mxu0
        %v2661 = vadd.f32 %v2576, %v2660
        %2662 = vmatmul.bf16.gmra.mxu0 %v2617
        %v2663 = vpop.f32.mrf.mxu0
        %v2664 = vadd.f32 %v2576, %v2663
        %v2665 = vpop.f32.mrf.mxu0
        %v2666 = vadd.f32 %v2576, %v2665
        %2667 = vdwg.mxu0
        %v2668 = vmax.f32 %v2629, 0.0
        %v2669 = vmax.f32 %v2631, 0.0
        %v2670 = vmax.f32 %v2634, 0.0
        %v2671 = vmax.f32 %v2636, 0.0
        %v2672 = vmax.f32 %v2639, 0.0
        %v2673 = vmax.f32 %v2641, 0.0
        %v2674 = vmax.f32 %v2644, 0.0
        %v2675 = vmax.f32 %v2646, 0.0
        %v2676 = vmax.f32 %v2649, 0.0
        %v2677 = vmax.f32 %v2651, 0.0
        %v2678 = vmax.f32 %v2654, 0.0
        %v2679 = vmax.f32 %v2656, 0.0
        %v2680 = vmax.f32 %v2659, 0.0
        %v2681 = vmax.f32 %v2661, 0.0
        %v2682 = vmax.f32 %v2664, 0.0
        %v2683 = vmax.f32 %v2666, 0.0
        %v2684 = vmul.f32 %v2683, %v584
        %v2685 = vmul.f32 %v2668, %v585
        %v2686 = vmul.f32 %v2669, %v586
        %v2687 = vmul.f32 %v2670, %v587
        %v2688 = vmul.f32 %v2671, %v588
        %v2689 = vmul.f32 %v2672, %v589
        %v2690 = vmul.f32 %v2673, %v590
        %v2691 = vmul.f32 %v2674, %v591
        %v2692 = vmul.f32 %v2675, %v592
        %v2693 = vmul.f32 %v2676, %v593
        %v2694 = vmul.f32 %v2677, %v594
        %v2695 = vmul.f32 %v2678, %v595
        %v2696 = vmul.f32 %v2679, %v596
        %v2697 = vmul.f32 %v2680, %v597
        %v2698 = vmul.f32 %v2681, %v598
        %v2699 = vmul.f32 %v2682, %v599
        %v2700 = vrot.slane %v2668, 4
        %v2701 = vrot.slane %v2669, 4
        %v2702 = vrot.slane %v2670, 4
        %v2703 = vrot.slane %v2671, 4
        %v2704 = vrot.slane %v2672, 4
        %v2705 = vrot.slane %v2673, 4
        %v2706 = vrot.slane %v2674, 4
        %v2707 = vrot.slane %v2675, 4
        %v2708 = vrot.slane %v2676, 4
        %v2709 = vrot.slane %v2677, 4
        %v2710 = vrot.slane %v2678, 4
        %v2711 = vrot.slane %v2679, 4
        %v2712 = vrot.slane %v2680, 4
        %v2713 = vrot.slane %v2681, 4
        %v2714 = vrot.slane %v2682, 4
        %v2715 = vrot.slane %v2683, 4
        %v2716 = vsel %vm1559, %v2714, %v2715
        %v2717 = vsel %vm1559, %v2713, %v2714
        %v2718 = vsel %vm1559, %v2712, %v2713
        %v2719 = vsel %vm1559, %v2711, %v2712
        %v2720 = vsel %vm1559, %v2710, %v2711
        %v2721 = vsel %vm1559, %v2709, %v2710
        %v2722 = vsel %vm1559, %v2708, %v2709
        %v2723 = vsel %vm1559, %v2707, %v2708
        %v2724 = vsel %vm1559, %v2706, %v2707
        %v2725 = vsel %vm1559, %v2705, %v2706
        %v2726 = vsel %vm1559, %v2704, %v2705
        %v2727 = vsel %vm1559, %v2703, %v2704
        %v2728 = vsel %vm1559, %v2702, %v2703
        %v2729 = vsel %vm1559, %v2701, %v2702
        %v2730 = vsel %vm1559, %v2700, %v2701
        %v2731 = vsel %vm1559, %v2715, %v2700
        %v2732 = vmul.f32 %v2731, %v536
        %v2733 = vmul.f32 %v2730, %v537
        %v2734 = vmul.f32 %v2729, %v538
        %v2735 = vmul.f32 %v2728, %v539
        %v2736 = vmul.f32 %v2727, %v540
        %v2737 = vmul.f32 %v2726, %v541
        %v2738 = vmul.f32 %v2725, %v542
        %v2739 = vmul.f32 %v2724, %v543
        %v2740 = vmul.f32 %v2723, %v544
        %v2741 = vmul.f32 %v2722, %v545
        %v2742 = vmul.f32 %v2721, %v546
        %v2743 = vmul.f32 %v2720, %v547
        %v2744 = vmul.f32 %v2719, %v548
        %v2745 = vmul.f32 %v2718, %v549
        %v2746 = vmul.f32 %v2717, %v550
        %v2747 = vmul.f32 %v2716, %v551
        %2764 = vrot.lane.b32.xlu0 %v2732, 16
        %v2765 = vpop.permute.xlu0 %2764
        %2766 = vrot.lane.b32.xlu0 %v2733, 16
        %v2767 = vpop.permute.xlu0 %2766
        %2768 = vrot.lane.b32.xlu0 %v2734, 16
        %v2769 = vpop.permute.xlu0 %2768
        %2770 = vrot.lane.b32.xlu0 %v2735, 16
        %v2771 = vpop.permute.xlu0 %2770
        %2772 = vrot.lane.b32.xlu0 %v2736, 16
        %v2773 = vpop.permute.xlu0 %2772
        %2774 = vrot.lane.b32.xlu0 %v2737, 16
        %v2775 = vpop.permute.xlu0 %2774
        %2776 = vrot.lane.b32.xlu0 %v2738, 16
        %v2777 = vpop.permute.xlu0 %2776
        %2778 = vrot.lane.b32.xlu0 %v2739, 16
        %v2779 = vpop.permute.xlu0 %2778
        %2780 = vrot.lane.b32.xlu0 %v2740, 16
        %v2781 = vpop.permute.xlu0 %2780
        %2782 = vrot.lane.b32.xlu0 %v2741, 16
        %v2783 = vpop.permute.xlu0 %2782
        %2784 = vrot.lane.b32.xlu0 %v2742, 16
        %v2785 = vpop.permute.xlu0 %2784
        %2786 = vrot.lane.b32.xlu0 %v2743, 16
        %v2787 = vpop.permute.xlu0 %2786
        %2788 = vrot.lane.b32.xlu0 %v2744, 16
        %v2789 = vpop.permute.xlu0 %2788
        %2790 = vrot.lane.b32.xlu0 %v2745, 16
        %v2791 = vpop.permute.xlu0 %2790
        %2792 = vrot.lane.b32.xlu0 %v2746, 16
        %v2793 = vpop.permute.xlu0 %2792
        %2794 = vrot.lane.b32.xlu0 %v2747, 16
        %v2795 = vpop.permute.xlu0 %2794
        %2828 = vrot.lane.b32.xlu0 %v2668, 32
        %v2829 = vpop.permute.xlu0 %2828
        %2830 = vrot.lane.b32.xlu0 %v2669, 32
        %v2831 = vpop.permute.xlu0 %2830
        %2832 = vrot.lane.b32.xlu0 %v2670, 32
        %v2833 = vpop.permute.xlu0 %2832
        %2834 = vrot.lane.b32.xlu0 %v2671, 32
        %v2835 = vpop.permute.xlu0 %2834
        %2836 = vrot.lane.b32.xlu0 %v2672, 32
        %v2837 = vpop.permute.xlu0 %2836
        %2838 = vrot.lane.b32.xlu0 %v2673, 32
        %v2839 = vpop.permute.xlu0 %2838
        %2840 = vrot.lane.b32.xlu0 %v2674, 32
        %v2841 = vpop.permute.xlu0 %2840
        %2842 = vrot.lane.b32.xlu0 %v2675, 32
        %v2843 = vpop.permute.xlu0 %2842
        %2844 = vrot.lane.b32.xlu0 %v2676, 32
        %v2845 = vpop.permute.xlu0 %2844
        %2846 = vrot.lane.b32.xlu0 %v2677, 32
        %v2847 = vpop.permute.xlu0 %2846
        %2848 = vrot.lane.b32.xlu0 %v2678, 32
        %v2849 = vpop.permute.xlu0 %2848
        %2850 = vrot.lane.b32.xlu0 %v2679, 32
        %v2851 = vpop.permute.xlu0 %2850
        %2852 = vrot.lane.b32.xlu0 %v2680, 32
        %v2853 = vpop.permute.xlu0 %2852
        %2854 = vrot.lane.b32.xlu0 %v2681, 32
        %v2855 = vpop.permute.xlu0 %2854
        %2856 = vrot.lane.b32.xlu0 %v2682, 32
        %v2857 = vpop.permute.xlu0 %2856
        %2858 = vrot.lane.b32.xlu0 %v2683, 32
        %v2859 = vpop.permute.xlu0 %2858
        %v2876 = vsel %vm875, %v2684, %v2765
        %v2877 = vsel %vm875, %v2685, %v2767
        %v2878 = vsel %vm875, %v2686, %v2769
        %v2879 = vsel %vm875, %v2687, %v2771
        %v2880 = vsel %vm875, %v2688, %v2773
        %v2881 = vsel %vm875, %v2689, %v2775
        %v2882 = vsel %vm875, %v2690, %v2777
        %v2883 = vsel %vm875, %v2691, %v2779
        %v2884 = vsel %vm875, %v2692, %v2781
        %v2885 = vsel %vm875, %v2693, %v2783
        %v2886 = vsel %vm875, %v2694, %v2785
        %v2887 = vsel %vm875, %v2695, %v2787
        %v2888 = vsel %vm875, %v2696, %v2789
        %v2889 = vsel %vm875, %v2697, %v2791
        %v2890 = vsel %vm875, %v2698, %v2793
        %v2891 = vsel %vm875, %v2699, %v2795
        %v2892 = vsel %vm1249, %v2876, %v2829
        %v2893 = vsel %vm1249, %v2877, %v2831
        %v2894 = vsel %vm1249, %v2878, %v2833
        %v2895 = vsel %vm1249, %v2879, %v2835
        %v2896 = vsel %vm1249, %v2880, %v2837
        %v2897 = vsel %vm1249, %v2881, %v2839
        %v2898 = vsel %vm1249, %v2882, %v2841
        %v2899 = vsel %vm1249, %v2883, %v2843
        %v2900 = vsel %vm1249, %v2884, %v2845
        %v2901 = vsel %vm1249, %v2885, %v2847
        %v2902 = vsel %vm1249, %v2886, %v2849
        %v2903 = vsel %vm1249, %v2887, %v2851
        %v2904 = vsel %vm1249, %v2888, %v2853
        %v2905 = vsel %vm1249, %v2889, %v2855
        %v2906 = vsel %vm1249, %v2890, %v2857
        %v2907 = vsel %vm1249, %v2891, %v2859
        %v2908 = vpack.c.bf16 %v2893, %v2892
        %v2909 = vpack.c.bf16 %v2895, %v2894
        %v2910 = vpack.c.bf16 %v2897, %v2896
        %v2911 = vpack.c.bf16 %v2899, %v2898
        %v2912 = vpack.c.bf16 %v2901, %v2900
        %v2913 = vpack.c.bf16 %v2903, %v2902
        %v2914 = vpack.c.bf16 %v2905, %v2904
        %v2915 = vpack.c.bf16 %v2907, %v2906
        %v2916 = vld [vmem:[%s1 + $0x88] sm:$0xf]
        %v2917 = vld [vmem:[%s1 + $0x8c] sm:$0xf]
        %v2918 = vld [vmem:[%s1 + $0x90] sm:$0xf]
        %v2919 = vld [vmem:[%s1 + $0x94] sm:$0xf]
        %v2920 = vld [vmem:[%s1 + $0x98] sm:$0xf]
        %v2921 = vld [vmem:[%s1 + $0x9c] sm:$0xf]
        %v2922 = vld [vmem:[%s1 + $0xa0] sm:$0x1]
        %v2923 = vunpack.c.l.bf16 %v2922
        %v2924 = vperm.slane %v2923, 0
        %v2931 = vunpack.c.l.b16 %v2916
        %v2932 = vunpack.c.l.b16 %v2917
        %v2933 = vunpack.c.l.b16 %v2918
        %v2934 = vunpack.c.l.b16 %v2919
        %v2935 = vunpack.c.l.b16 %v2920
        %v2936 = vunpack.c.l.b16 %v2921
        %v2937 = vpack.c.b16 %v2932, %v2931
        %v2938 = vpack.c.b16 %v2934, %v2933
        %v2939 = vpack.c.b16 %v2936, %v2935
        %v2944 = vsel %vm1301, %v2908, 0
        %v2947 = vsel %vm1301, %v2909, 0
        %v2950 = vsel %vm1301, %v2910, 0
        %v2953 = vsel %vm1301, %v2911, 0
        %v2956 = vsel %vm1301, %v2912, 0
        %v2959 = vsel %vm1301, %v2913, 0
        %v2962 = vsel %vm1301, %v2914, 0
        %v2965 = vsel %vm1301, %v2915, 0
        %2967 = vmatpush.bf16.msra.mxu0 0
        %2968 = vmatpush.bf16.msra.mxu0 0
        %2969 = vmatpush.bf16.msra.mxu0 0
        %2970 = vmatpush.bf16.msra.mxu0 0
        %2971 = vmatpush.bf16.msra.mxu0 0
        %2972 = vmatpush.bf16.msra.mxu0 %v2939
        %2973 = vmatpush.bf16.msra.mxu0 %v2938
        %2974 = vmatpush.bf16.msra.mxu0 %v2937
        %2975 = vmatmul.bf16.gmra.mxu0 %v2944
        %v2976 = vpop.f32.mrf.mxu0
        %v2977 = vadd.f32 %v2924, %v2976
        %v2978 = vpop.f32.mrf.mxu0
        %v2979 = vadd.f32 %v2924, %v2978
        %2980 = vmatmul.bf16.gmra.mxu0 %v2947
        %v2981 = vpop.f32.mrf.mxu0
        %v2982 = vadd.f32 %v2924, %v2981
        %v2983 = vpop.f32.mrf.mxu0
        %v2984 = vadd.f32 %v2924, %v2983
        %2985 = vmatmul.bf16.gmra.mxu0 %v2950
        %v2986 = vpop.f32.mrf.mxu0
        %v2987 = vadd.f32 %v2924, %v2986
        %v2988 = vpop.f32.mrf.mxu0
        %v2989 = vadd.f32 %v2924, %v2988
        %2990 = vmatmul.bf16.gmra.mxu0 %v2953
        %v2991 = vpop.f32.mrf.mxu0
        %v2992 = vadd.f32 %v2924, %v2991
        %v2993 = vpop.f32.mrf.mxu0
        %v2994 = vadd.f32 %v2924, %v2993
        %2995 = vmatmul.bf16.gmra.mxu0 %v2956
        %v2996 = vpop.f32.mrf.mxu0
        %v2997 = vadd.f32 %v2924, %v2996
        %v2998 = vpop.f32.mrf.mxu0
        %v2999 = vadd.f32 %v2924, %v2998
        %3000 = vmatmul.bf16.gmra.mxu0 %v2959
        %v3001 = vpop.f32.mrf.mxu0
        %v3002 = vadd.f32 %v2924, %v3001
        %v3003 = vpop.f32.mrf.mxu0
        %v3004 = vadd.f32 %v2924, %v3003
        %3005 = vmatmul.bf16.gmra.mxu0 %v2962
        %v3006 = vpop.f32.mrf.mxu0
        %v3007 = vadd.f32 %v2924, %v3006
        %v3008 = vpop.f32.mrf.mxu0
        %v3009 = vadd.f32 %v2924, %v3008
        %3010 = vmatmul.bf16.gmra.mxu0 %v2965
        %v3011 = vpop.f32.mrf.mxu0
        %v3012 = vadd.f32 %v2924, %v3011
        %v3013 = vpop.f32.mrf.mxu0
        %v3014 = vadd.f32 %v2924, %v3013
        %3015 = vdwg.mxu0
        %v3016 = vmax.f32 %v2977, 0.0
        %v3017 = vmax.f32 %v2979, 0.0
        %v3018 = vmax.f32 %v2982, 0.0
        %v3019 = vmax.f32 %v2984, 0.0
        %v3020 = vmax.f32 %v2987, 0.0
        %v3021 = vmax.f32 %v2989, 0.0
        %v3022 = vmax.f32 %v2992, 0.0
        %v3023 = vmax.f32 %v2994, 0.0
        %v3024 = vmax.f32 %v2997, 0.0
        %v3025 = vmax.f32 %v2999, 0.0
        %v3026 = vmax.f32 %v3002, 0.0
        %v3027 = vmax.f32 %v3004, 0.0
        %v3028 = vmax.f32 %v3007, 0.0
        %v3029 = vmax.f32 %v3009, 0.0
        %v3030 = vmax.f32 %v3012, 0.0
        %v3031 = vmax.f32 %v3014, 0.0
        %v3032 = vadd.f32 %v3016, %v2320
        %v3033 = vadd.f32 %v3017, %v2321
        %v3034 = vadd.f32 %v3018, %v2322
        %v3035 = vadd.f32 %v3019, %v2323
        %v3036 = vadd.f32 %v3020, %v2324
        %v3037 = vadd.f32 %v3021, %v2325
        %v3038 = vadd.f32 %v3022, %v2326
        %v3039 = vadd.f32 %v3023, %v2327
        %v3040 = vadd.f32 %v3024, %v2328
        %v3041 = vadd.f32 %v3025, %v2329
        %v3042 = vadd.f32 %v3026, %v2330
        %v3043 = vadd.f32 %v3027, %v2331
        %v3044 = vadd.f32 %v3028, %v2332
        %v3045 = vadd.f32 %v3029, %v2333
        %v3046 = vadd.f32 %v3030, %v2334
        %v3047 = vadd.f32 %v3031, %v2335
        %v3048 = vmax.f32 %v3032, 0.0
        %v3049 = vmax.f32 %v3033, 0.0
        %v3050 = vmax.f32 %v3034, 0.0
        %v3051 = vmax.f32 %v3035, 0.0
        %v3052 = vmax.f32 %v3036, 0.0
        %v3053 = vmax.f32 %v3037, 0.0
        %v3054 = vmax.f32 %v3038, 0.0
        %v3055 = vmax.f32 %v3039, 0.0
        %v3056 = vmax.f32 %v3040, 0.0
        %v3057 = vmax.f32 %v3041, 0.0
        %v3058 = vmax.f32 %v3042, 0.0
        %v3059 = vmax.f32 %v3043, 0.0
        %v3060 = vmax.f32 %v3044, 0.0
        %v3061 = vmax.f32 %v3045, 0.0
        %v3062 = vmax.f32 %v3046, 0.0
        %v3063 = vmax.f32 %v3047, 0.0
        %v3064 = vmax.f32 %v3048, 0.0
        %v3065 = vmax.f32 %v3049, 0.0
        %v3066 = vmax.f32 %v3050, 0.0
        %v3067 = vmax.f32 %v3051, 0.0
        %v3068 = vmax.f32 %v3052, 0.0
        %v3069 = vmax.f32 %v3053, 0.0
        %v3070 = vmax.f32 %v3054, 0.0
        %v3071 = vmax.f32 %v3055, 0.0
        %v3072 = vmax.f32 %v3056, 0.0
        %v3073 = vmax.f32 %v3057, 0.0
        %v3074 = vmax.f32 %v3058, 0.0
        %v3075 = vmax.f32 %v3059, 0.0
        %v3076 = vmax.f32 %v3060, 0.0
        %v3077 = vmax.f32 %v3061, 0.0
        %v3078 = vmax.f32 %v3062, 0.0
        %v3079 = vmax.f32 %v3063, 0.0
        %v3080 = vld [vmem:[%s2] sm:$0xf]
        %v3081 = vld [vmem:[%s2 + $0x4] sm:$0xf]
        %v3082 = vld [vmem:[%s2 + $0x8] sm:$0xf]
        %v3083 = vld [vmem:[%s2 + $0xc] sm:$0xf]
        %v3084 = vpack.c.bf16 %v3065, %v3064
        %v3085 = vpack.c.bf16 %v3067, %v3066
        %v3086 = vpack.c.bf16 %v3069, %v3068
        %v3087 = vpack.c.bf16 %v3071, %v3070
        %v3088 = vpack.c.bf16 %v3073, %v3072
        %v3089 = vpack.c.bf16 %v3075, %v3074
        %v3090 = vpack.c.bf16 %v3077, %v3076
        %v3091 = vpack.c.bf16 %v3079, %v3078
        %v3096 = vunpack.c.l.b16 %v3080
        %v3097 = vunpack.c.l.b16 %v3081
        %v3098 = vunpack.c.l.b16 %v3082
        %v3099 = vunpack.c.l.b16 %v3083
        %v3100 = vpack.c.b16 %v3097, %v3096
        %v3101 = vpack.c.b16 %v3099, %v3098
        %3104 = vmatpush.bf16.msra.mxu0 %v3091
        %3105 = vmatpush.bf16.msra.mxu0 %v3090
        %3106 = vmatpush.bf16.msra.mxu0 %v3089
        %3107 = vmatpush.bf16.msra.mxu0 %v3088
        %3108 = vmatpush.bf16.msra.mxu0 %v3087
        %3109 = vmatpush.bf16.msra.mxu0 %v3086
        %3110 = vmatpush.bf16.msra.mxu0 %v3085
        %3111 = vmatpush.bf16.msra.mxu0 %v3084
        %3112 = vmatmul.bf16.gmra.mxu0 %v3100
        %v3113 = vpop.f32.mrf.mxu0
        %v3114 = vadd.f32 0.0, %v3113
        %v3115 = vpop.f32.mrf.mxu0
        %v3116 = vadd.f32 0.0, %v3115
        %3117 = vmatmul.bf16.gmra.mxu0 %v3101
        %v3118 = vpop.f32.mrf.mxu0
        %v3119 = vadd.f32 0.0, %v3118
        %v3120 = vpop.f32.mrf.mxu0
        %v3121 = vadd.f32 0.0, %v3120
        %3122 = vdwg.mxu0
        %3124 = vrot.lane.b32.xlu0 %v3116, 16
        %v3125 = vpop.permute.xlu0 %3124
        %3128 = vrot.lane.b32.xlu0 %v3119, 32
        %v3129 = vpop.permute.xlu0 %3128
        %3132 = vrot.lane.b32.xlu0 %v3121, 48
        %v3133 = vpop.permute.xlu0 %3132
        %v3135 = vsel %vm875, %v3114, %v3125
        %v3136 = vsel %vm1249, %v3135, %v3129
        %v3137 = vsel %vm1301, %v3136, %v3133
        %v3138 = vld [vmem:[%s3] sm:$0x1]
        %v3140 = vperm.slane %v3138, 0
        %v3142 = vadd.f32 %v3137, %v3140
        %vm3143 = vcmask 523264
        %3144 = vst.msk [vmem:[%s191] sm:$0xff] %vm3143, %v3142
        %s3145 = sand.u32 %s115, 1
        %s3146 = scalar_lea.sflag [#allocation3], %s3145
        %s3147 = sand.u32 %s115, 1
        %s3148 = smul.addr %s3147, 8
        %s3149 = scalar_lea.vmem [#allocation2], %s3148
        // Predicated region
        $region37: #{tpu_custom_call.1} parent=35 // pred_check
          %p3150 = pneg %p125
        $region38: #{tpu_custom_call.1} parent=35 // pred_check_branch
          %3152 = sbr.rel (%p3150) target = $region40
        $region39: #{tpu_custom_call.1} parent=35 // pred_region
          %3154 = vsyncadd %s3146, 0
          %s3155 = smul.addr %s18, 8
          %s3156 = scalar_lea.hbm %s4, %s3155
          %s3158 = sshll.u32 %s3149, 4
          %s3159 = int_to_ptr.vmem [resolvable:$true] %s3158
          %s3160 = sshll.u32 %s3156, 4
          %s3161 = int_to_ptr.hbm [resolvable:$true] %s3160
          %3163 = dma.vmem_to_hbm [thread:$0]  %s3159, 128, %s3161, %s3146
        $region40: #{tpu_custom_call.1} parent=35 // pred_fallthru
          _
      $region36: #{tpu_custom_call.1} parent=5 // pred_fallthru
        _
      %p3164 = scmp.le.s32.totalorder 2, %s13
      // Predicated region
      $region41: #{tpu_custom_call.1} parent=5 // pred_check
        %p3165 = pneg %p3164
      $region42: #{tpu_custom_call.1} parent=5 // pred_check_branch
        %3167 = sbr.rel (%p3165) target = $region44
      $region43: #{tpu_custom_call.1} parent=5 // pred_region
        %s3168 = ssub.s32 %s13, 2
        // Predicated region
        $region45: #{tpu_custom_call.1} parent=43 // pred_check
          %p3169 = pneg %p131
        $region46: #{tpu_custom_call.1} parent=43 // pred_check_branch
          %3171 = sbr.rel (%p3169) target = $region48
        $region47: #{tpu_custom_call.1} parent=43 // pred_region
          %s3172 = sand.u32 %s116, 1
          %s3173 = scalar_lea.sflag [#allocation3], %s3172
          %s3174 = sand.u32 %s116, 1
          %s3175 = smul.addr %s3174, 8
          %s3176 = scalar_lea.vmem [#allocation2], %s3175
          %3178 = dma.done %s3173, 128
        $region48: #{tpu_custom_call.1} parent=43 // pred_fallthru
          _
      $region44: #{tpu_custom_call.1} parent=5 // pred_fallthru
        _
    $region6: #{tpu_custom_call.1} parent=1 // loop_footer
      %s17 = sadd.s32 1, %s13
    $region7: #{tpu_custom_call.1} parent=1 // loop_footer_branch
      %12 = sbr.rel target = $region3
    $region8: #{tpu_custom_call.1} parent=1 // loop_exit
      _
    %3179 = vsyncpa [#allocation3], 1
    %s3180 = scalar_lea.sflag [#allocation3], 1
    %3181 = vsyncpa %s3180, 1

</llo_original>
